<compile_context>
chip_gen: v7x
topology: tpu7x:2x2x1
jax: 0.10.0
libtpu: 0.0.40
codegen_flags: <defaults>
</compile_context>

<pallas_src>
import functools

import jax
import jax.numpy as jnp
from jax.experimental import pallas as pl
from jax.experimental.pallas import tpu as pltpu


# ----------------------------- kernel ---------------------------------------


def _make_moe_kernel(T, sh):
    """T = routed slots per tile, sh = per-expert hidden width (static)."""

    def kernel(sched_ref,                        # SMEM int32 [R*T] routed expert ids
               xb_ref,                           # [TS, sd]  bf16  expert column slice of x
               rm_ref,                           # [1,1,TS,1] f32  per-row routing mask
               w1_ref, b1_ref, w2_ref, b2_ref,   # resident [E, ...] expert weights
               wo_ref,                           # [1, sh, D] bf16 routed w_out slice
               y_ref,                            # [TS, D]  f32  residual rows
               bo_ref,                           # [1, D]   f32  final bias
               out_ref,                          # [TS, D]  f32  output tile
               h2_buf,                           # VMEM (TS, T*sh) bf16 staged h2
               wo_buf):                          # VMEM (T*sh, D) bf16 staged w_out
        r = pl.program_id(0)                     # token tile (parallel)
        t = pl.program_id(1)                     # routed slot (arbitrary)

        e = sched_ref[r * T + t]                 # dynamic expert id (SMEM scalar)

        # per-expert 2-layer MLP on the whole tile; bf16 MXU operands, f32 acc.
        h = jnp.dot(xb_ref[...], w1_ref[e],
                    preferred_element_type=jnp.float32) + b1_ref[e]
        h = jax.nn.gelu(h, approximate=True)
        h2 = jnp.dot(h.astype(jnp.bfloat16), w2_ref[e],
                     preferred_element_type=jnp.float32) + b2_ref[e]

        # per-row 0/1 routing mask (zero rows for samples not routed to e;
        # all-zero for padded duplicate slots), then stage for the fused dot.
        h2 = (h2 * rm_ref[0, 0]).astype(jnp.bfloat16)
        wo_blk = wo_ref[0]
        for tt in range(T):                      # static bands -> static slices only
            @pl.when(t == tt)
            def _stage(tt=tt):
                h2_buf[:, tt * sh:(tt + 1) * sh] = h2
                wo_buf[tt * sh:(tt + 1) * sh, :] = wo_blk

        @pl.when(t == T - 1)
        def _finalize():
            out_ref[...] = (y_ref[...] + bo_ref[...]
                            + jnp.dot(h2_buf[...], wo_buf[...],
                                      preferred_element_type=jnp.float32))

    return kernel


# ----------------------------- tiling helpers --------------------------------


def _vmem_bytes(TS, T, D, sd, sh, E):
    """Rough VMEM footprint estimate for a given tile config."""
    f32, bf16, lane = 4, 2, 128
    b = 0
    b += 2 * TS * D * f32                        # output tile (double buffer)
    b += 2 * TS * D * f32                        # residual rows
    b += 2 * TS * sd * bf16                      # x expert-column slice (bf16)
    b += 2 * sh * D * bf16                       # streamed wo slice
    b += 2 * TS * lane * f32                     # row mask (lane-padded)
    b += 2 * E * (sd * sh + sh * sh) * bf16      # resident w1 / w2
    b += 2 * E * 2 * max(sh, lane) * f32         # resident b1 / b2
    b += 2 * D * f32                             # b_out
    b += TS * T * sh * bf16 + T * sh * D * bf16  # scratch (h2_buf, wo_buf)
    return b


def _choose_tile(BS, S, E, topk, D, sd, sh, vmem_budget, target=512):
    cands = [ts for ts in range(8, BS + 1, 8)
             if BS % ts == 0 and (ts % S == 0 or S % ts == 0)]
    assert cands, "B*S must admit an 8-row-aligned, sample-compatible tile"

    def fits(ts):
        T = min(E, max(1, ts // S) * topk)
        return _vmem_bytes(ts, T, D, sd, sh, E) <= vmem_budget

    fitting = [ts for ts in cands if fits(ts)]
    if not fitting:
        ts = min(cands)                          # best effort; limit raised below
        pool = cands
    else:
        small = [c for c in fitting if c <= target]
        ts = max(small) if small else min(fitting)
        pool = fitting

    # Prefer >= 2 tiles (v7x: 2 TensorCores share the "parallel" axis) as long
    # as it costs at most half the tile size.
    if BS // ts < 2:
        better = [c for c in pool if BS // c >= 2 and c >= max(8, ts // 2)]
        if better:
            ts = max(better)
    return ts


# ----------------------------- forward wrapper -------------------------------


def s_mh_mlp_forward(x, params, topk):
    """x: [B, S, D] float32.  Returns [B, S, D] float32."""
    B, S, D = x.shape
    E, sd, sh = params["w1"].shape
    assert sd * E == D
    assert sd % 128 == 0 and sh % 128 == 0, "sub dims must be lane-aligned (128)"
    BS = B * S
    assert BS % 8 == 0

    # Per-generation VMEM budget (v7x: 64 MiB, v5e/v6e: 128 MiB).
    try:
        phys_vmem = int(pltpu.get_tpu_info().vmem_capacity_bytes)
    except Exception:
        phys_vmem = 64 * 1024 * 1024             # conservative default (v7x)

    TS = _choose_tile(BS, S, E, topk, D, sd, sh, int(phys_vmem * 0.6))
    R = BS // TS
    T = min(E, max(1, TS // S) * topk)           # routed slots per tile

    # ---- routing (tiny, plain JAX glue) ----
    x0 = x[:, :4096]
    xf = x0.reshape(B, -1)
    assert params["w_switch"].shape[0] == xf.shape[1], "switch expects S == max_seq_len"
    route_prob = jax.nn.softmax(xf @ params["w_switch"] + params["b_switch"], axis=-1)
    _, topk_idx = jax.lax.top_k(route_prob, topk)
    mask = jnp.zeros((B, E), jnp.int32).at[jnp.arange(B)[:, None], topk_idx].set(1)

    # ---- per-tile routed schedule + per-row masks ----
    row_sample = jnp.arange(BS) // S             # sample index of each row
    row_mask = mask[row_sample]                  # [BS, E] 0/1
    rem = row_mask.reshape(R, TS, E)             # per-tile rows
    tile_mask = rem.max(axis=1)                  # [R, E] union of routed experts
    # active experts first, stable ascending expert id
    score = (tile_mask * (E + 1) + (E - 1 - jnp.arange(E))[None, :]).astype(jnp.float32)
    _, ids = jax.lax.top_k(score, T)             # [R, T]
    n_act = tile_mask.sum(axis=1)                # [R] number of unique routed experts
    slot = jnp.arange(T)[None, :]
    last_valid = jnp.take_along_axis(ids, jnp.clip(n_act - 1, 0, T - 1)[:, None], axis=1)
    # padded slots repeat the last valid expert id -> block index unchanged -> no DMA
    sched2d = jnp.where(slot < n_act[:, None], ids, last_valid).astype(jnp.int32)
    sched = sched2d.reshape(-1)                  # [R*T] int32 (SMEM scalar prefetch)
    rm = jnp.take_along_axis(rem, jnp.broadcast_to(sched2d[:, None, :], (R, TS, T)), axis=2)
    rm = rm.astype(jnp.float32) * (slot < n_act[:, None]).astype(jnp.float32)[:, None, :]
    rowmask = jnp.transpose(rm, (0, 2, 1)).reshape(R, T, TS, 1)   # [R, T, TS, 1]

    # ---- kernel operands ----
    x2 = x.reshape(BS, D)                        # f32 residual rows
    xb = x2.astype(jnp.bfloat16)                 # bf16 copy for the expert-slice stream
    w1 = params["w1"].astype(jnp.bfloat16)
    w2 = params["w2"].astype(jnp.bfloat16)
    wo = params["w_out"].astype(jnp.bfloat16)

    need = _vmem_bytes(TS, T, D, sd, sh, E)
    vmem_limit = int(min(phys_vmem * 0.85, max(need + (8 << 20), 32 << 20)))

    kernel = _make_moe_kernel(T, sh)

    grid_spec = pltpu.PrefetchScalarGridSpec(
        num_scalar_prefetch=1,
        grid=(R, T),
        in_specs=[
            # x expert-column slice, routed via the scalar-prefetched schedule
            pl.BlockSpec((TS, sd), lambda r, t, s, _T=T: (r, s[r * _T + t])),
            # per-row routing mask for this (tile, slot)
            pl.BlockSpec((1, 1, TS, 1), lambda r, t, s: (r, t, 0, 0)),
            # small per-expert weights: VMEM-resident (constant index -> one fetch)
            pl.BlockSpec((E, sd, sh), lambda r, t, s: (0, 0, 0)),   # w1
            pl.BlockSpec((E, 1, sh), lambda r, t, s: (0, 0, 0)),    # b1
            pl.BlockSpec((E, sh, sh), lambda r, t, s: (0, 0, 0)),   # w2
            pl.BlockSpec((E, 1, sh), lambda r, t, s: (0, 0, 0)),    # b2
            # final-projection slice, routed per slot
            pl.BlockSpec((1, sh, D), lambda r, t, s, _T=T: (s[r * _T + t], 0, 0)),
            # residual rows + final bias (constant across the slot axis)
            pl.BlockSpec((TS, D), lambda r, t, s: (r, 0)),
            pl.BlockSpec((1, D), lambda r, t, s: (0, 0)),
        ],
        out_specs=pl.BlockSpec((TS, D), lambda r, t, s: (r, 0)),
        scratch_shapes=[
            pltpu.VMEM((TS, T * sh), jnp.bfloat16),   # staged h2 (all slots)
            pltpu.VMEM((T * sh, D), jnp.bfloat16),    # staged routed w_out
        ],
    )

    out2 = pl.pallas_call(
        kernel,
        out_shape=jax.ShapeDtypeStruct((BS, D), jnp.float32),
        grid_spec=grid_spec,
        compiler_params=pltpu.CompilerParams(
            dimension_semantics=("parallel", "arbitrary"),
            vmem_limit_bytes=vmem_limit,
        ),
    )(sched, xb, rowmask, w1, params["b1"], w2, params["b2"], wo, x2, params["b_out"])

    return out2.reshape(B, S, D)


# ----------------------------- reference & params ----------------------------


def _reference(x, params, topk):
    """Pure-JAX reference with the same numerics (bf16 operands, f32 accum)."""
    B, S, D = x.shape
    E, sd, sh = params["w1"].shape
    bf = jnp.bfloat16
    xf = x[:, :4096].reshape(B, -1)
    route_prob = jax.nn.softmax(xf @ params["w_switch"] + params["b_switch"], -1)
    _, topk_idx = jax.lax.top_k(route_prob, topk)
    mask = jnp.zeros((B, E), jnp.float32).at[
        jnp.arange(B)[:, None], topk_idx].set(1.0)
    out = x + params["b_out"][0]
    for e in range(E):
        xe = x[:, :, e * sd:(e + 1) * sd].astype(bf)
        h = jnp.dot(xe, params["w1"][e].astype(bf),
                    preferred_element_type=jnp.float32) + params["b1"][e, 0]
        h = jax.nn.gelu(h, approximate=True)
        h2 = jnp.dot(h.astype(bf), params["w2"][e].astype(bf),
                     preferred_element_type=jnp.float32) + params["b2"][e, 0]
        h2 = h2 * mask[:, e][:, None, None]
        out = out + jnp.dot(h2.astype(bf), params["w_out"][e].astype(bf),
                            preferred_element_type=jnp.float32)
    return out


def make_params(key, dim, hidden_dim, n_experts, max_seq_len):
    sd = dim // n_experts
    sh = hidden_dim // n_experts
    ks = jax.random.split(key, 6)
    scale = 0.05
    return {
        # switch: Linear(dim * max_seq_len -> n_experts), stored as [in, out]
        "w_switch": scale * jax.random.normal(ks[0], (dim * max_seq_len, n_experts), jnp.float32),
        "b_switch": scale * jax.random.normal(ks[1], (n_experts,), jnp.float32),
        # per-expert MLP2: [E, sd, sh], [E, 1, sh], [E, sh, sh], [E, 1, sh]
        "w1": scale * jax.random.normal(ks[2], (n_experts, sd, sh), jnp.float32),
        "b1": scale * jax.random.normal(ks[3], (n_experts, 1, sh), jnp.float32),
        "w2": scale * jax.random.normal(ks[4], (n_experts, sh, sh), jnp.float32),
        "b2": scale * jax.random.normal(ks[5], (n_experts, 1, sh), jnp.float32),
        # linear2: Linear(hidden_dim -> dim), split per expert as [E, sh, dim]
        "w_out": scale * jax.random.normal(jax.random.fold_in(key, 7),
                                           (n_experts, sh, dim), jnp.float32),
        "b_out": scale * jax.random.normal(jax.random.fold_in(key, 8),
                                           (1, dim), jnp.float32),
    }


if __name__ == "__main__":
    dim, hidden_dim, n_experts, topk = 512, 512, 4, 2
    key = jax.random.PRNGKey(0)

    # Two small configs: the second forces cross-sample tiles to exercise the
    # union-schedule + per-row-mask path.
    for batch, seq_len in ((2, 8), (4, 8)):
        max_seq_len = seq_len
        kx, kp = jax.random.split(jax.random.fold_in(key, batch))
        x = jax.random.normal(kx, (batch, seq_len, dim), jnp.float32)
        params = make_params(kp, dim, hidden_dim, n_experts, max_seq_len)

        fwd = jax.jit(functools.partial(s_mh_mlp_forward, topk=topk))
        out = fwd(x, params)
        jax.block_until_ready(out)

        ref = _reference(x, params, topk)
        assert out.shape == (batch, seq_len, dim)
        max_err = float(jnp.max(jnp.abs(out - ref)))
        assert jnp.allclose(out, ref, rtol=2e-3, atol=2e-3), \
            f"mismatch vs reference (B={batch}, max err {max_err})"

    print("KERNEL_OK")
</pallas_src>

<mosaic_0001>
module attributes {stable_mosaic.version = 11 : i64} {
  func.func @kernel(%arg0: i32, %arg1: i32, %arg2: memref<4xi32, #tpu.memory_space<smem>>, %arg3: memref<8x128xbf16, #tpu.memory_space<vmem>>, %arg4: memref<1x1x8x1xf32, #tpu.memory_space<vmem>>, %arg5: memref<4x128x128xbf16, #tpu.memory_space<vmem>>, %arg6: memref<4x1x128xf32, #tpu.memory_space<vmem>>, %arg7: memref<4x128x128xbf16, #tpu.memory_space<vmem>>, %arg8: memref<4x1x128xf32, #tpu.memory_space<vmem>>, %arg9: memref<1x128x512xbf16, #tpu.memory_space<vmem>>, %arg10: memref<8x512xf32, #tpu.memory_space<vmem>>, %arg11: memref<1x512xf32, #tpu.memory_space<vmem>>, %arg12: memref<8x512xf32, #tpu.memory_space<vmem>>, %arg13: memref<8x256xbf16, #tpu.memory_space<vmem>>, %arg14: memref<256x512xbf16, #tpu.memory_space<vmem>>) attributes {dimension_semantics = [#tpu.dimension_semantics<parallel>, #tpu.dimension_semantics<arbitrary>], iteration_bounds = array<i64: 2, 2>, scalar_prefetch = 1 : i64, scratch_operands = 2 : i64, tpu.core_type = #tpu.core_type<tc>, window_params = [{transform_indices = @transform_0, window_bounds = array<i64: 8, 128>}, {transform_indices = @transform_1, window_bounds = array<i64: 1, 1, 8, 1>}, {pipeline_mode = #tpu.pipeline_mode<synchronous>, transform_indices = @transform_2, window_bounds = array<i64: 4, 128, 128>}, {pipeline_mode = #tpu.pipeline_mode<synchronous>, transform_indices = @transform_3, window_bounds = array<i64: 4, 1, 128>}, {pipeline_mode = #tpu.pipeline_mode<synchronous>, transform_indices = @transform_4, window_bounds = array<i64: 4, 128, 128>}, {pipeline_mode = #tpu.pipeline_mode<synchronous>, transform_indices = @transform_5, window_bounds = array<i64: 4, 1, 128>}, {transform_indices = @transform_6, window_bounds = array<i64: 1, 128, 512>}, {transform_indices = @transform_7, window_bounds = array<i64: 8, 512>}, {pipeline_mode = #tpu.pipeline_mode<synchronous>, transform_indices = @transform_8, window_bounds = array<i64: 1, 512>}, {transform_indices = @transform_9, window_bounds = array<i64: 8, 512>}]} {
    %c2_i32 = arith.constant 2 : i32
    %0 = arith.muli %arg0, %c2_i32 : i32
    %1 = arith.addi %0, %arg1 : i32
    %2 = arith.index_cast %1 : i32 to index
    %3 = memref.load %arg2[%2] : memref<4xi32, #tpu.memory_space<smem>>
    %c0 = arith.constant 0 : index
    %c0_0 = arith.constant 0 : index
    %4 = vector.load %arg3[%c0, %c0_0] : memref<8x128xbf16, #tpu.memory_space<vmem>>, vector<8x128xbf16>
    %5 = arith.index_cast %3 : i32 to index
    %c0_1 = arith.constant 0 : index
    %c0_2 = arith.constant 0 : index
    %6 = vector.load %arg5[%5, %c0_1, %c0_2] : memref<4x128x128xbf16, #tpu.memory_space<vmem>>, vector<1x128x128xbf16>
    %7 = vector.shape_cast %6 : vector<1x128x128xbf16> to vector<128x128xbf16>
    %cst = arith.constant dense<0.000000e+00> : vector<8x128xf32>
    %8 = tpu.matmul %4, %7, %cst {dimension_numbers = #tpu.dot_dimension_numbers<[1], [0], [0], [1], [0, 0, 1, 1], [], []>} : vector<8x128xbf16>, vector<128x128xbf16>, vector<8x128xf32> -> vector<8x128xf32>
    %9 = arith.index_cast %3 : i32 to index
    %c0_3 = arith.constant 0 : index
    %c0_4 = arith.constant 0 : index
    %10 = vector.load %arg6[%9, %c0_3, %c0_4] : memref<4x1x128xf32, #tpu.memory_space<vmem>>, vector<1x1x128xf32>
    %11 = vector.shape_cast %10 : vector<1x1x128xf32> to vector<1x128xf32>
    %12 = vector.broadcast %11 : vector<1x128xf32> to vector<8x128xf32>
    %13 = arith.addf %8, %12 : vector<8x128xf32>
    %14 = arith.mulf %13, %13 : vector<8x128xf32>
    %15 = arith.mulf %13, %14 : vector<8x128xf32>
    %cst_5 = arith.constant 4.471500e-02 : f32
    %16 = vector.broadcast %cst_5 : f32 to vector<8x128xf32>
    %17 = arith.mulf %16, %15 : vector<8x128xf32>
    %18 = arith.addf %13, %17 : vector<8x128xf32>
    %cst_6 = arith.constant 0.797884583 : f32
    %19 = vector.broadcast %cst_6 : f32 to vector<8x128xf32>
    %20 = arith.mulf %19, %18 : vector<8x128xf32>
    %21 = math.tanh %20 : vector<8x128xf32>
    %cst_7 = arith.constant 1.000000e+00 : f32
    %22 = vector.broadcast %cst_7 : f32 to vector<8x128xf32>
    %23 = arith.addf %22, %21 : vector<8x128xf32>
    %cst_8 = arith.constant 5.000000e-01 : f32
    %24 = vector.broadcast %cst_8 : f32 to vector<8x128xf32>
    %25 = arith.mulf %24, %23 : vector<8x128xf32>
    %26 = arith.mulf %13, %25 : vector<8x128xf32>
    %27 = arith.truncf %26 : vector<8x128xf32> to vector<8x128xbf16>
    %28 = arith.index_cast %3 : i32 to index
    %c0_9 = arith.constant 0 : index
    %c0_10 = arith.constant 0 : index
    %29 = vector.load %arg7[%28, %c0_9, %c0_10] : memref<4x128x128xbf16, #tpu.memory_space<vmem>>, vector<1x128x128xbf16>
    %30 = vector.shape_cast %29 : vector<1x128x128xbf16> to vector<128x128xbf16>
    %cst_11 = arith.constant dense<0.000000e+00> : vector<8x128xf32>
    %31 = tpu.matmul %27, %30, %cst_11 {dimension_numbers = #tpu.dot_dimension_numbers<[1], [0], [0], [1], [0, 0, 1, 1], [], []>} : vector<8x128xbf16>, vector<128x128xbf16>, vector<8x128xf32> -> vector<8x128xf32>
    %32 = arith.index_cast %3 : i32 to index
    %c0_12 = arith.constant 0 : index
    %c0_13 = arith.constant 0 : index
    %33 = vector.load %arg8[%32, %c0_12, %c0_13] : memref<4x1x128xf32, #tpu.memory_space<vmem>>, vector<1x1x128xf32>
    %34 = vector.shape_cast %33 : vector<1x1x128xf32> to vector<1x128xf32>
    %35 = vector.broadcast %34 : vector<1x128xf32> to vector<8x128xf32>
    %36 = arith.addf %31, %35 : vector<8x128xf32>
    %c0_14 = arith.constant 0 : index
    %c0_15 = arith.constant 0 : index
    %c0_16 = arith.constant 0 : index
    %c0_17 = arith.constant 0 : index
    %37 = vector.load %arg4[%c0_14, %c0_15, %c0_16, %c0_17] : memref<1x1x8x1xf32, #tpu.memory_space<vmem>>, vector<1x1x8x1xf32>
    %38 = vector.shape_cast %37 : vector<1x1x8x1xf32> to vector<8x1xf32>
    %39 = vector.broadcast %38 : vector<8x1xf32> to vector<8x128xf32>
    %40 = arith.mulf %36, %39 : vector<8x128xf32>
    %41 = arith.truncf %40 : vector<8x128xf32> to vector<8x128xbf16>
    %c0_18 = arith.constant 0 : index
    %c0_19 = arith.constant 0 : index
    %c0_20 = arith.constant 0 : index
    %42 = vector.load %arg9[%c0_18, %c0_19, %c0_20] : memref<1x128x512xbf16, #tpu.memory_space<vmem>>, vector<1x128x512xbf16>
    %43 = vector.shape_cast %42 : vector<1x128x512xbf16> to vector<128x512xbf16>
    %c0_i32 = arith.constant 0 : i32
    %44 = arith.cmpi eq, %arg1, %c0_i32 : i32
    %45 = arith.extui %44 : i1 to i32
    %c0_i32_21 = arith.constant 0 : i32
    %46 = arith.cmpi ne, %45, %c0_i32_21 : i32
    scf.if %46 {
      %c0_25 = arith.constant 0 : index
      %c0_26 = arith.constant 0 : index
      %53 = vector.load %arg13[%c0_25, %c0_26] : memref<8x256xbf16, #tpu.memory_space<vmem>>, vector<8x128xbf16>
      tpu.vector_store %arg13[%c0_25, %c0_26], %41 {strides = array<i32>} : memref<8x256xbf16, #tpu.memory_space<vmem>>, vector<8x128xbf16>,
      %c0_27 = arith.constant 0 : index
      %c0_28 = arith.constant 0 : index
      %54 = vector.load %arg14[%c0_27, %c0_28] : memref<256x512xbf16, #tpu.memory_space<vmem>>, vector<128x512xbf16>
      tpu.vector_store %arg14[%c0_27, %c0_28], %43 {strides = array<i32>} : memref<256x512xbf16, #tpu.memory_space<vmem>>, vector<128x512xbf16>,
    } else {
    }
    %c1_i32 = arith.constant 1 : i32
    %47 = arith.cmpi eq, %arg1, %c1_i32 : i32
    %48 = arith.extui %47 : i1 to i32
    %c0_i32_22 = arith.constant 0 : i32
    %49 = arith.cmpi ne, %48, %c0_i32_22 : i32
    scf.if %49 {
      %c0_25 = arith.constant 0 : index
      %c128 = arith.constant 128 : index
      %53 = vector.load %arg13[%c0_25, %c128] : memref<8x256xbf16, #tpu.memory_space<vmem>>, vector<8x128xbf16>
      tpu.vector_store %arg13[%c0_25, %c128], %41 {strides = array<i32>} : memref<8x256xbf16, #tpu.memory_space<vmem>>, vector<8x128xbf16>,
      %c128_26 = arith.constant 128 : index
      %c0_27 = arith.constant 0 : index
      %54 = vector.load %arg14[%c128_26, %c0_27] : memref<256x512xbf16, #tpu.memory_space<vmem>>, vector<128x512xbf16>
      tpu.vector_store %arg14[%c128_26, %c0_27], %43 {strides = array<i32>} : memref<256x512xbf16, #tpu.memory_space<vmem>>, vector<128x512xbf16>,
    } else {
    }
    %c1_i32_23 = arith.constant 1 : i32
    %50 = arith.cmpi eq, %arg1, %c1_i32_23 : i32
    %51 = arith.extui %50 : i1 to i32
    %c0_i32_24 = arith.constant 0 : i32
    %52 = arith.cmpi ne, %51, %c0_i32_24 : i32
    scf.if %52 {
      %c0_25 = arith.constant 0 : index
      %c0_26 = arith.constant 0 : index
      %53 = vector.load %arg10[%c0_25, %c0_26] : memref<8x512xf32, #tpu.memory_space<vmem>>, vector<8x512xf32>
      %c0_27 = arith.constant 0 : index
      %c0_28 = arith.constant 0 : index
      %54 = vector.load %arg11[%c0_27, %c0_28] : memref<1x512xf32, #tpu.memory_space<vmem>>, vector<1x512xf32>
      %55 = vector.broadcast %54 : vector<1x512xf32> to vector<8x512xf32>
      %56 = arith.addf %53, %55 : vector<8x512xf32>
      %c0_29 = arith.constant 0 : index
      %c0_30 = arith.constant 0 : index
      %57 = vector.load %arg13[%c0_29, %c0_30] : memref<8x256xbf16, #tpu.memory_space<vmem>>, vector<8x256xbf16>
      %c0_31 = arith.constant 0 : index
      %c0_32 = arith.constant 0 : index
      %58 = vector.load %arg14[%c0_31, %c0_32] : memref<256x512xbf16, #tpu.memory_space<vmem>>, vector<256x512xbf16>
      %cst_33 = arith.constant dense<0.000000e+00> : vector<8x512xf32>
      %59 = tpu.matmul %57, %58, %cst_33 {dimension_numbers = #tpu.dot_dimension_numbers<[1], [0], [0], [1], [0, 0, 1, 1], [], []>} : vector<8x256xbf16>, vector<256x512xbf16>, vector<8x512xf32> -> vector<8x512xf32>
      %60 = arith.addf %56, %59 : vector<8x512xf32>
      %c0_34 = arith.constant 0 : index
      %c0_35 = arith.constant 0 : index
      %61 = vector.load %arg12[%c0_34, %c0_35] : memref<8x512xf32, #tpu.memory_space<vmem>>, vector<8x512xf32>
      tpu.vector_store %arg12[%c0_34, %c0_35], %60 {strides = array<i32>} : memref<8x512xf32, #tpu.memory_space<vmem>>, vector<8x512xf32>,
    } else {
    }
    return
  }
  func.func @transform_0(%arg0: i32, %arg1: i32, %arg2: memref<4xi32, #tpu.memory_space<smem>>) -> (i32, i32) {
    %c2_i32 = arith.constant 2 : i32
    %0 = arith.muli %arg0, %c2_i32 : i32
    %1 = arith.addi %0, %arg1 : i32
    %2 = arith.index_cast %1 : i32 to index
    %3 = memref.load %arg2[%2] : memref<4xi32, #tpu.memory_space<smem>>
    %c0_i32 = arith.constant 0 : i32
    return %arg0, %3 : i32, i32
  }
  func.func @transform_1(%arg0: i32, %arg1: i32, %arg2: memref<4xi32, #tpu.memory_space<smem>>) -> (i32, i32, i32, i32) {
    %c0_i32 = arith.constant 0 : i32
    %c0_i32_0 = arith.constant 0 : i32
    %c0_i32_1 = arith.constant 0 : i32
    return %arg0, %arg1, %c0_i32, %c0_i32_0 : i32, i32, i32, i32
  }
  func.func @transform_2(%arg0: i32, %arg1: i32, %arg2: memref<4xi32, #tpu.memory_space<smem>>) -> (i32, i32, i32) {
    %c0_i32 = arith.constant 0 : i32
    %c0_i32_0 = arith.constant 0 : i32
    %c0_i32_1 = arith.constant 0 : i32
    %c0_i32_2 = arith.constant 0 : i32
    return %c0_i32, %c0_i32_0, %c0_i32_1 : i32, i32, i32
  }
  func.func @transform_3(%arg0: i32, %arg1: i32, %arg2: memref<4xi32, #tpu.memory_space<smem>>) -> (i32, i32, i32) {
    %c0_i32 = arith.constant 0 : i32
    %c0_i32_0 = arith.constant 0 : i32
    %c0_i32_1 = arith.constant 0 : i32
    %c0_i32_2 = arith.constant 0 : i32
    return %c0_i32, %c0_i32_0, %c0_i32_1 : i32, i32, i32
  }
  func.func @transform_4(%arg0: i32, %arg1: i32, %arg2: memref<4xi32, #tpu.memory_space<smem>>) -> (i32, i32, i32) {
    %c0_i32 = arith.constant 0 : i32
    %c0_i32_0 = arith.constant 0 : i32
    %c0_i32_1 = arith.constant 0 : i32
    %c0_i32_2 = arith.constant 0 : i32
    return %c0_i32, %c0_i32_0, %c0_i32_1 : i32, i32, i32
  }
  func.func @transform_5(%arg0: i32, %arg1: i32, %arg2: memref<4xi32, #tpu.memory_space<smem>>) -> (i32, i32, i32) {
    %c0_i32 = arith.constant 0 : i32
    %c0_i32_0 = arith.constant 0 : i32
    %c0_i32_1 = arith.constant 0 : i32
    %c0_i32_2 = arith.constant 0 : i32
    return %c0_i32, %c0_i32_0, %c0_i32_1 : i32, i32, i32
  }
  func.func @transform_6(%arg0: i32, %arg1: i32, %arg2: memref<4xi32, #tpu.memory_space<smem>>) -> (i32, i32, i32) {
    %c2_i32 = arith.constant 2 : i32
    %0 = arith.muli %arg0, %c2_i32 : i32
    %1 = arith.addi %0, %arg1 : i32
    %2 = arith.index_cast %1 : i32 to index
    %3 = memref.load %arg2[%2] : memref<4xi32, #tpu.memory_space<smem>>
    %c0_i32 = arith.constant 0 : i32
    %c0_i32_0 = arith.constant 0 : i32
    %c0_i32_1 = arith.constant 0 : i32
    return %3, %c0_i32, %c0_i32_0 : i32, i32, i32
  }
  func.func @transform_7(%arg0: i32, %arg1: i32, %arg2: memref<4xi32, #tpu.memory_space<smem>>) -> (i32, i32) {
    %c0_i32 = arith.constant 0 : i32
    %c0_i32_0 = arith.constant 0 : i32
    return %arg0, %c0_i32 : i32, i32
  }
  func.func @transform_8(%arg0: i32, %arg1: i32, %arg2: memref<4xi32, #tpu.memory_space<smem>>) -> (i32, i32) {
    %c0_i32 = arith.constant 0 : i32
    %c0_i32_0 = arith.constant 0 : i32
    %c0_i32_1 = arith.constant 0 : i32
    return %c0_i32, %c0_i32_0 : i32, i32
  }
  func.func @transform_9(%arg0: i32, %arg1: i32, %arg2: memref<4xi32, #tpu.memory_space<smem>>) -> (i32, i32) {
    %c0_i32 = arith.constant 0 : i32
    %c0_i32_0 = arith.constant 0 : i32
    return %arg0, %c0_i32 : i32, i32
  }
}

</mosaic_0001>

<llo_original>
// kernel: s_mh_mlp_forward.1
$region0: #{s_mh_mlp_forward.1}
  #allocation0 [shape = 'u32[]', space=smem, size = 0x4, offset = 0x4, fixed_abs, tag = 'smem constant byte address 0x4 - core index']
  #allocation1 [shape = 'u32[144,128]{1,0:T(1,128)}', space=vmem, size = 0x12000, scoped, tag = 'internal scratch']
  #allocation2 [shape = 'bf16[8,256]{1,0:T(8,128)(2,1)}', space=vmem, size = 0x1000, scoped, tag = 'scratch operand']
  #allocation3 [shape = 'bf16[256,512]{1,0:T(16,128)(2,1)}', space=vmem, size = 0x40000, scoped, tag = 'scratch operand']
  #allocation4 [shape = 's32[1]{0}', space=sflag, size = 0x4, scoped, tag = 'scoped memory for s_mh_mlp_forward.1']
  #allocation5 [shape = 'u8[512]{0}', space=smem, size = 0x200, scoped, tag = 'prefetched SMEM operand 0']
  %s0 = inlined_call_operand.vmem [shape: s32[4], index: 0, kind: input, shape index: {}]
  %s1 = inlined_call_operand.vmem [shape: bf16[16,512], index: 1, kind: input, shape index: {}]
  %s2 = inlined_call_operand.vmem [shape: f32[2,2,8,1], index: 2, kind: input, shape index: {}]
  %s3 = inlined_call_operand.vmem [shape: bf16[4,128,128], index: 3, kind: input, shape index: {}]
  %s4 = inlined_call_operand.vmem [shape: f32[4,1,128], index: 4, kind: input, shape index: {}]
  %s5 = inlined_call_operand.vmem [shape: bf16[4,128,128], index: 5, kind: input, shape index: {}]
  %s6 = inlined_call_operand.vmem [shape: f32[4,1,128], index: 6, kind: input, shape index: {}]
  %s7 = inlined_call_operand.vmem [shape: bf16[4,128,512], index: 7, kind: input, shape index: {}]
  %s8 = inlined_call_operand.vmem [shape: f32[16,512], index: 8, kind: input, shape index: {}]
  %s9 = inlined_call_operand.vmem [shape: f32[1,512], index: 9, kind: input, shape index: {}]
  %s10 = inlined_call_operand.hbm [shape: f32[16,512], index: 10, kind: output, shape index: {}]
  %s11 = sld [smem:[#allocation0]]
  $region77: #{s_mh_mlp_forward.1} parent=0
    _
  %s13 = ssub.s32 1, %s11
  %s14 = scalar_select 0, %s13, %s11
  %s15 = sshll.u32 %s0, 4
  %s16 = int_to_ptr.vmem [resolvable:$true] %s15
  %18 = dma.vmem_to_smem %s16, 16, [#allocation5], [#allocation4]
  %19 = dma.done [#allocation4], 16
  %20 = sfence
  $region1: #{s_mh_mlp_forward.1} parent=0
    #allocation6 [shape = 'u8[32768]{0}', space=vmem, size = 0x8000, scoped, tag = 'output window, operand 0']
    #allocation7 [shape = 's32[2]{0}', space=sflag, size = 0x8, scoped, tag = 'scoped memory for s_mh_mlp_forward.1']
    %21 = vsyncpa [#allocation7], 0
    %s22 = scalar_lea.sflag [#allocation7], 1
    %23 = vsyncpa %s22, 0
    loop: start=0, step=1, limit=6
    $region2: #{s_mh_mlp_forward.1} parent=1 // loop_pre_header
      _
    $region3: #{s_mh_mlp_forward.1} parent=1 // loop_header
      %s25 = sphi 0, %s29
      %p26 = scmp.ge.s32.totalorder %s25, 6
      %s32 = sphi 0, %s44
      %s33 = sphi 0, %s40
      %s34 = sphi 0, %s32
      %s35 = sphi 0, %s33
      %s36 = sphi 0, %s34
      %s37 = sphi 0, %s35
      %s55 = sphi 0, %s57
      %s58 = sphi 0, %s55
      %s59 = sphi 0, %s58
      %s75 = sphi 0, %s59
      %s83 = sphi 0, %s85
      %s86 = sphi 0, %s83
      %s87 = sphi 0, %s86
      %s103 = sphi 0, %s87
      %s107 = sphi 0, %s107
      %s109 = sphi 0, %s107
      %s110 = sphi 0, %s109
      %s124 = sphi 0, %s110
      %s128 = sphi 0, %s128
      %s130 = sphi 0, %s128
      %s131 = sphi 0, %s130
      %s145 = sphi 0, %s131
      %s149 = sphi 0, %s149
      %s151 = sphi 0, %s149
      %s152 = sphi 0, %s151
      %s166 = sphi 0, %s152
      %s170 = sphi 0, %s170
      %s172 = sphi 0, %s170
      %s173 = sphi 0, %s172
      %s187 = sphi 0, %s173
      %s199 = sphi 0, %s201
      %s202 = sphi 0, %s199
      %s203 = sphi 0, %s202
      %s219 = sphi 0, %s203
      %s225 = sphi 0, %s227
      %s228 = sphi 0, %s225
      %s229 = sphi 0, %s228
      %s245 = sphi 0, %s229
      %s249 = sphi 0, %s249
      %s251 = sphi 0, %s249
      %s252 = sphi 0, %s251
      %s266 = sphi 0, %s252
      %s272 = sphi 0, %s274
      %s275 = sphi 0, %s272
      %s276 = sphi 0, %s275
      %s292 = sphi 0, %s276
    $region4: #{s_mh_mlp_forward.1} parent=1 // loop_header_branch
      %28 = sbr.rel (%p26) target = $region8
    $region5: #{s_mh_mlp_forward.1} parent=1 // loop_body
      %s30 = ssub.s32 %s25, 1
      %s31 = ssub.s32 %s25, 2
      %s38 = sadd.s32 1, %s33
      %p39 = scmp.ge.s32.totalorder %s38, 2
      %s40 = scalar_select %p39, 0, %s38
      %s41 = sadd.s32 1, %s32
      %s42 = scalar_select %p39, %s41, %s32
      %p43 = scmp.ge.s32.totalorder %s42, 2
      %s44 = scalar_select %p43, 0, %s42
      %s45 = smul.u32 %s32, 2
      %s46 = sadd.s32 %s45, %s33
      %s47 = sld [smem:[#allocation5 + %s46]]
      %s48 = smul.u32 %s44, 2
      %s49 = sadd.s32 %s48, %s40
      %s50 = sld [smem:[#allocation5 + %s49]]
      %s51 = ssub.s32 %s32, %s44
      %s52 = ssub.s32 %s47, %s50
      %s53 = sor.u32 %s51, %s52
      %p54 = scmp.eq.s32.totalorder %s53, 0
      %s56 = sadd.s32 %s55, 1
      %s57 = scalar_select %p54, %s55, %s56
      %p60 = pneg %p54
      %p61 = scmp.eq.s32.totalorder %s25, 3
      %p62 = por %p60, %p61
      %p63 = scmp.ne.s32.totalorder %s55, %s58
      %p64 = scmp.eq.s32.totalorder %s25, 0
      %p65 = por %p63, %p64
      %p66 = scmp.ne.s32.totalorder %s55, %s58
      %p67 = scmp.eq.s32.totalorder %s30, 3
      %p68 = por %p66, %p67
      %p69 = scmp.ne.s32.totalorder %s58, %s59
      %p70 = scmp.eq.s32.totalorder %s30, 0
      %p71 = por %p69, %p70
      %p72 = scmp.ne.s32.totalorder %s58, %s59
      %p73 = scmp.eq.s32.totalorder %s31, 3
      %p74 = por %p72, %p73
      %p76 = scmp.ne.s32.totalorder %s59, %s75
      %p77 = scmp.eq.s32.totalorder %s31, 0
      %p78 = por %p76, %p77
      %s79 = ssub.s32 %s32, %s44
      %s80 = ssub.s32 %s33, %s40
      %s81 = sor.u32 %s79, %s80
      %p82 = scmp.eq.s32.totalorder %s81, 0
      %s84 = sadd.s32 %s83, 1
      %s85 = scalar_select %p82, %s83, %s84
      %p88 = pneg %p82
      %p89 = scmp.eq.s32.totalorder %s25, 3
      %p90 = por %p88, %p89
      %p91 = scmp.ne.s32.totalorder %s83, %s86
      %p92 = scmp.eq.s32.totalorder %s25, 0
      %p93 = por %p91, %p92
      %p94 = scmp.ne.s32.totalorder %s83, %s86
      %p95 = scmp.eq.s32.totalorder %s30, 3
      %p96 = por %p94, %p95
      %p97 = scmp.ne.s32.totalorder %s86, %s87
      %p98 = scmp.eq.s32.totalorder %s30, 0
      %p99 = por %p97, %p98
      %p100 = scmp.ne.s32.totalorder %s86, %s87
      %p101 = scmp.eq.s32.totalorder %s31, 3
      %p102 = por %p100, %p101
      %p104 = scmp.ne.s32.totalorder %s87, %s103
      %p105 = scmp.eq.s32.totalorder %s31, 0
      %p106 = por %p104, %p105
      %s108 = sadd.s32 %s107, 1
      %p111 = scmp.eq.s32.totalorder %s25, 3
      %p112 = scmp.ne.s32.totalorder %s107, %s109
      %p113 = scmp.eq.s32.totalorder %s25, 0
      %p114 = por %p112, %p113
      %p115 = scmp.ne.s32.totalorder %s107, %s109
      %p116 = scmp.eq.s32.totalorder %s30, 3
      %p117 = por %p115, %p116
      %p118 = scmp.ne.s32.totalorder %s109, %s110
      %p119 = scmp.eq.s32.totalorder %s30, 0
      %p120 = por %p118, %p119
      %p121 = scmp.ne.s32.totalorder %s109, %s110
      %p122 = scmp.eq.s32.totalorder %s31, 3
      %p123 = por %p121, %p122
      %p125 = scmp.ne.s32.totalorder %s110, %s124
      %p126 = scmp.eq.s32.totalorder %s31, 0
      %p127 = por %p125, %p126
      %s129 = sadd.s32 %s128, 1
      %p132 = scmp.eq.s32.totalorder %s25, 3
      %p133 = scmp.ne.s32.totalorder %s128, %s130
      %p134 = scmp.eq.s32.totalorder %s25, 0
      %p135 = por %p133, %p134
      %p136 = scmp.ne.s32.totalorder %s128, %s130
      %p137 = scmp.eq.s32.totalorder %s30, 3
      %p138 = por %p136, %p137
      %p139 = scmp.ne.s32.totalorder %s130, %s131
      %p140 = scmp.eq.s32.totalorder %s30, 0
      %p141 = por %p139, %p140
      %p142 = scmp.ne.s32.totalorder %s130, %s131
      %p143 = scmp.eq.s32.totalorder %s31, 3
      %p144 = por %p142, %p143
      %p146 = scmp.ne.s32.totalorder %s131, %s145
      %p147 = scmp.eq.s32.totalorder %s31, 0
      %p148 = por %p146, %p147
      %s150 = sadd.s32 %s149, 1
      %p153 = scmp.eq.s32.totalorder %s25, 3
      %p154 = scmp.ne.s32.totalorder %s149, %s151
      %p155 = scmp.eq.s32.totalorder %s25, 0
      %p156 = por %p154, %p155
      %p157 = scmp.ne.s32.totalorder %s149, %s151
      %p158 = scmp.eq.s32.totalorder %s30, 3
      %p159 = por %p157, %p158
      %p160 = scmp.ne.s32.totalorder %s151, %s152
      %p161 = scmp.eq.s32.totalorder %s30, 0
      %p162 = por %p160, %p161
      %p163 = scmp.ne.s32.totalorder %s151, %s152
      %p164 = scmp.eq.s32.totalorder %s31, 3
      %p165 = por %p163, %p164
      %p167 = scmp.ne.s32.totalorder %s152, %s166
      %p168 = scmp.eq.s32.totalorder %s31, 0
      %p169 = por %p167, %p168
      %s171 = sadd.s32 %s170, 1
      %p174 = scmp.eq.s32.totalorder %s25, 3
      %p175 = scmp.ne.s32.totalorder %s170, %s172
      %p176 = scmp.eq.s32.totalorder %s25, 0
      %p177 = por %p175, %p176
      %p178 = scmp.ne.s32.totalorder %s170, %s172
      %p179 = scmp.eq.s32.totalorder %s30, 3
      %p180 = por %p178, %p179
      %p181 = scmp.ne.s32.totalorder %s172, %s173
      %p182 = scmp.eq.s32.totalorder %s30, 0
      %p183 = por %p181, %p182
      %p184 = scmp.ne.s32.totalorder %s172, %s173
      %p185 = scmp.eq.s32.totalorder %s31, 3
      %p186 = por %p184, %p185
      %p188 = scmp.ne.s32.totalorder %s173, %s187
      %p189 = scmp.eq.s32.totalorder %s31, 0
      %p190 = por %p188, %p189
      %s191 = smul.u32 %s32, 2
      %s192 = sadd.s32 %s191, %s33
      %s193 = sld [smem:[#allocation5 + %s192]]
      %s194 = smul.u32 %s44, 2
      %s195 = sadd.s32 %s194, %s40
      %s196 = sld [smem:[#allocation5 + %s195]]
      %s197 = ssub.s32 %s193, %s196
      %p198 = scmp.eq.s32.totalorder %s197, 0
      %s200 = sadd.s32 %s199, 1
      %s201 = scalar_select %p198, %s199, %s200
      %p204 = pneg %p198
      %p205 = scmp.eq.s32.totalorder %s25, 3
      %p206 = por %p204, %p205
      %p207 = scmp.ne.s32.totalorder %s199, %s202
      %p208 = scmp.eq.s32.totalorder %s25, 0
      %p209 = por %p207, %p208
      %p210 = scmp.ne.s32.totalorder %s199, %s202
      %p211 = scmp.eq.s32.totalorder %s30, 3
      %p212 = por %p210, %p211
      %p213 = scmp.ne.s32.totalorder %s202, %s203
      %p214 = scmp.eq.s32.totalorder %s30, 0
      %p215 = por %p213, %p214
      %p216 = scmp.ne.s32.totalorder %s202, %s203
      %p217 = scmp.eq.s32.totalorder %s31, 3
      %p218 = por %p216, %p217
      %p220 = scmp.ne.s32.totalorder %s203, %s219
      %p221 = scmp.eq.s32.totalorder %s31, 0
      %p222 = por %p220, %p221
      %s223 = ssub.s32 %s32, %s44
      %p224 = scmp.eq.s32.totalorder %s223, 0
      %s226 = sadd.s32 %s225, 1
      %s227 = scalar_select %p224, %s225, %s226
      %p230 = pneg %p224
      %p231 = scmp.eq.s32.totalorder %s25, 3
      %p232 = por %p230, %p231
      %p233 = scmp.ne.s32.totalorder %s225, %s228
      %p234 = scmp.eq.s32.totalorder %s25, 0
      %p235 = por %p233, %p234
      %p236 = scmp.ne.s32.totalorder %s225, %s228
      %p237 = scmp.eq.s32.totalorder %s30, 3
      %p238 = por %p236, %p237
      %p239 = scmp.ne.s32.totalorder %s228, %s229
      %p240 = scmp.eq.s32.totalorder %s30, 0
      %p241 = por %p239, %p240
      %p242 = scmp.ne.s32.totalorder %s228, %s229
      %p243 = scmp.eq.s32.totalorder %s31, 3
      %p244 = por %p242, %p243
      %p246 = scmp.ne.s32.totalorder %s229, %s245
      %p247 = scmp.eq.s32.totalorder %s31, 0
      %p248 = por %p246, %p247
      %s250 = sadd.s32 %s249, 1
      %p253 = scmp.eq.s32.totalorder %s25, 3
      %p254 = scmp.ne.s32.totalorder %s249, %s251
      %p255 = scmp.eq.s32.totalorder %s25, 0
      %p256 = por %p254, %p255
      %p257 = scmp.ne.s32.totalorder %s249, %s251
      %p258 = scmp.eq.s32.totalorder %s30, 3
      %p259 = por %p257, %p258
      %p260 = scmp.ne.s32.totalorder %s251, %s252
      %p261 = scmp.eq.s32.totalorder %s30, 0
      %p262 = por %p260, %p261
      %p263 = scmp.ne.s32.totalorder %s251, %s252
      %p264 = scmp.eq.s32.totalorder %s31, 3
      %p265 = por %p263, %p264
      %p267 = scmp.ne.s32.totalorder %s252, %s266
      %p268 = scmp.eq.s32.totalorder %s31, 0
      %p269 = por %p267, %p268
      %s270 = ssub.s32 %s32, %s44
      %p271 = scmp.eq.s32.totalorder %s270, 0
      %s273 = sadd.s32 %s272, 1
      %s274 = scalar_select %p271, %s272, %s273
      %p277 = pneg %p271
      %p278 = scmp.eq.s32.totalorder %s25, 3
      %p279 = por %p277, %p278
      %p280 = scmp.ne.s32.totalorder %s272, %s275
      %p281 = scmp.eq.s32.totalorder %s25, 0
      %p282 = por %p280, %p281
      %p283 = scmp.ne.s32.totalorder %s272, %s275
      %p284 = scmp.eq.s32.totalorder %s30, 3
      %p285 = por %p283, %p284
      %p286 = scmp.ne.s32.totalorder %s275, %s276
      %p287 = scmp.eq.s32.totalorder %s30, 0
      %p288 = por %p286, %p287
      %p289 = scmp.ne.s32.totalorder %s275, %s276
      %p290 = scmp.eq.s32.totalorder %s31, 3
      %p291 = por %p289, %p290
      %p293 = scmp.ne.s32.totalorder %s276, %s292
      %p294 = scmp.eq.s32.totalorder %s31, 0
      %p295 = por %p293, %p294
      %p296 = scmp.le.s32.totalorder 1, %s25
      %p297 = scmp.lt.s32.totalorder %s25, 5
      %p298 = pnand %p296, %p297
      %p299 = pneg %p298
      // Predicated region
      $region9: #{s_mh_mlp_forward.1} parent=5 // pred_check
        _
      $region10: #{s_mh_mlp_forward.1} parent=5 // pred_check_branch
        %301 = sbr.rel (%p298) target = $region12
      $region11: #{s_mh_mlp_forward.1} parent=5 // pred_region
        %s302 = ssub.s32 %s25, 1
        // Predicated region
        $region13: #{s_mh_mlp_forward.1} parent=11 // pred_check
          %p303 = pneg %p120
        $region14: #{s_mh_mlp_forward.1} parent=11 // pred_check_branch
          %305 = sbr.rel (%p303) target = $region16
        $region15: #{s_mh_mlp_forward.1} parent=11 // pred_region
          _
        $region16: #{s_mh_mlp_forward.1} parent=11 // pred_fallthru
          _
        // Predicated region
        $region17: #{s_mh_mlp_forward.1} parent=11 // pred_check
          %p306 = pneg %p141
        $region18: #{s_mh_mlp_forward.1} parent=11 // pred_check_branch
          %308 = sbr.rel (%p306) target = $region20
        $region19: #{s_mh_mlp_forward.1} parent=11 // pred_region
          _
        $region20: #{s_mh_mlp_forward.1} parent=11 // pred_fallthru
          _
        // Predicated region
        $region21: #{s_mh_mlp_forward.1} parent=11 // pred_check
          %p309 = pneg %p162
        $region22: #{s_mh_mlp_forward.1} parent=11 // pred_check_branch
          %311 = sbr.rel (%p309) target = $region24
        $region23: #{s_mh_mlp_forward.1} parent=11 // pred_region
          _
        $region24: #{s_mh_mlp_forward.1} parent=11 // pred_fallthru
          _
        // Predicated region
        $region25: #{s_mh_mlp_forward.1} parent=11 // pred_check
          %p312 = pneg %p183
        $region26: #{s_mh_mlp_forward.1} parent=11 // pred_check_branch
          %314 = sbr.rel (%p312) target = $region28
        $region27: #{s_mh_mlp_forward.1} parent=11 // pred_region
          _
        $region28: #{s_mh_mlp_forward.1} parent=11 // pred_fallthru
          _
        // Predicated region
        $region29: #{s_mh_mlp_forward.1} parent=11 // pred_check
          %p315 = pneg %p262
        $region30: #{s_mh_mlp_forward.1} parent=11 // pred_check_branch
          %317 = sbr.rel (%p315) target = $region32
        $region31: #{s_mh_mlp_forward.1} parent=11 // pred_region
          _
        $region32: #{s_mh_mlp_forward.1} parent=11 // pred_fallthru
          _
      $region12: #{s_mh_mlp_forward.1} parent=5 // pred_fallthru
        _
      %p318 = scmp.lt.s32.totalorder %s25, 4
      // Predicated region
      $region33: #{s_mh_mlp_forward.1} parent=5 // pred_check
        %p319 = pneg %p318
      $region34: #{s_mh_mlp_forward.1} parent=5 // pred_check_branch
        %321 = sbr.rel (%p319) target = $region36
      $region35: #{s_mh_mlp_forward.1} parent=5 // pred_region
        // Predicated region
        $region37: #{s_mh_mlp_forward.1} parent=35 // pred_check
          %p322 = pneg %p65
        $region38: #{s_mh_mlp_forward.1} parent=35 // pred_check_branch
          %324 = sbr.rel (%p322) target = $region40
        $region39: #{s_mh_mlp_forward.1} parent=35 // pred_region
          %s325 = smul.u32 %s32, 2
          %s326 = sadd.s32 %s325, %s33
          %s327 = sld [smem:[#allocation5 + %s326]]
          %p328 = scmp.lt.s32.totalorder %s32, 1
          %s329 = scalar_select %p328, %s32, 1
          %p330 = scmp.lt.s32.totalorder %s327, 3
          %s331 = scalar_select %p330, %s327, 3
          %s332 = smul.addr %s329, 4
          %s333 = sadd.s32 %s331, %s332
          %s334 = smul.addr %s333, 4
          %s335 = scalar_lea.vmem %s1, %s334
          %s336 = smul.u32 %s32, 2
          %s337 = sadd.s32 %s336, %s33
          %s338 = sld [smem:[#allocation5 + %s337]]
        $region40: #{s_mh_mlp_forward.1} parent=35 // pred_fallthru
          _
        // Predicated region
        $region41: #{s_mh_mlp_forward.1} parent=35 // pred_check
          %p339 = pneg %p93
        $region42: #{s_mh_mlp_forward.1} parent=35 // pred_check_branch
          %341 = sbr.rel (%p339) target = $region44
        $region43: #{s_mh_mlp_forward.1} parent=35 // pred_region
          %p342 = scmp.lt.s32.totalorder %s32, 1
          %s343 = scalar_select %p342, %s32, 1
          %p344 = scmp.lt.s32.totalorder %s33, 1
          %s345 = scalar_select %p344, %s33, 1
          %s346 = smul.addr %s343, 2
          %s347 = sadd.s32 %s345, %s346
          %s348 = smul.addr %s347, 8
          %s349 = scalar_lea.vmem %s2, %s348
        $region44: #{s_mh_mlp_forward.1} parent=35 // pred_fallthru
          _
        // Predicated region
        $region45: #{s_mh_mlp_forward.1} parent=35 // pred_check
          %p350 = pneg %p209
        $region46: #{s_mh_mlp_forward.1} parent=35 // pred_check_branch
          %352 = sbr.rel (%p350) target = $region48
        $region47: #{s_mh_mlp_forward.1} parent=35 // pred_region
          %s353 = smul.u32 %s32, 2
          %s354 = sadd.s32 %s353, %s33
          %s355 = sld [smem:[#allocation5 + %s354]]
          %p356 = scmp.lt.s32.totalorder %s355, 3
          %s357 = scalar_select %p356, %s355, 3
          %s358 = smul.addr %s357, 64
          %s359 = smul.addr %s358, 4
          %s360 = scalar_lea.vmem %s7, %s359
          %s361 = smul.u32 %s32, 2
          %s362 = sadd.s32 %s361, %s33
          %s363 = sld [smem:[#allocation5 + %s362]]
        $region48: #{s_mh_mlp_forward.1} parent=35 // pred_fallthru
          _
        // Predicated region
        $region49: #{s_mh_mlp_forward.1} parent=35 // pred_check
          %p364 = pneg %p235
        $region50: #{s_mh_mlp_forward.1} parent=35 // pred_check_branch
          %366 = sbr.rel (%p364) target = $region52
        $region51: #{s_mh_mlp_forward.1} parent=35 // pred_region
          %p367 = scmp.lt.s32.totalorder %s32, 1
          %s368 = scalar_select %p367, %s32, 1
          %s369 = smul.addr %s368, 4
          %s370 = smul.addr %s369, 8
          %s371 = scalar_lea.vmem %s8, %s370
        $region52: #{s_mh_mlp_forward.1} parent=35 // pred_fallthru
          _
      $region36: #{s_mh_mlp_forward.1} parent=5 // pred_fallthru
        _
      %p372 = scmp.le.s32.totalorder 1, %s25
      %p373 = scmp.lt.s32.totalorder %s25, 5
      %p374 = pnand %p372, %p373
      %p375 = pneg %p374
      // Predicated region
      $region53: #{s_mh_mlp_forward.1} parent=5 // pred_check
        _
      $region54: #{s_mh_mlp_forward.1} parent=5 // pred_check_branch
        %377 = sbr.rel (%p374) target = $region56
      $region55: #{s_mh_mlp_forward.1} parent=5 // pred_region
        %s378 = ssub.s32 %s25, 1
        %s379 = smul.u32 %s34, 2
        %s380 = sadd.s32 %s379, %s35
        %s381 = sld [smem:[#allocation5 + %s380]]
        %p382 = scmp.lt.s32.totalorder %s34, 1
        %s383 = scalar_select %p382, %s34, 1
        %p384 = scmp.lt.s32.totalorder %s381, 3
        %s385 = scalar_select %p384, %s381, 3
        %s386 = smul.addr %s383, 4
        %s387 = sadd.s32 %s385, %s386
        %s388 = smul.addr %s387, 4
        %s389 = scalar_lea.vmem %s1, %s388
        %p390 = pneg %p71
        %p391 = pneg %p68
        %p392 = scmp.lt.s32.totalorder %s34, 1
        %s393 = scalar_select %p392, %s34, 1
        %p394 = scmp.lt.s32.totalorder %s35, 1
        %s395 = scalar_select %p394, %s35, 1
        %s396 = smul.addr %s393, 2
        %s397 = sadd.s32 %s395, %s396
        %s398 = smul.addr %s397, 8
        %s399 = scalar_lea.vmem %s2, %s398
        %p400 = pneg %p99
        %p401 = pneg %p96
        %p402 = pneg %p120
        %p403 = pneg %p117
        %p404 = pneg %p141
        %p405 = pneg %p138
        %p406 = pneg %p162
        %p407 = pneg %p159
        %p408 = pneg %p183
        %p409 = pneg %p180
        %s410 = smul.u32 %s34, 2
        %s411 = sadd.s32 %s410, %s35
        %s412 = sld [smem:[#allocation5 + %s411]]
        %p413 = scmp.lt.s32.totalorder %s412, 3
        %s414 = scalar_select %p413, %s412, 3
        %s415 = smul.addr %s414, 64
        %s416 = smul.addr %s415, 4
        %s417 = scalar_lea.vmem %s7, %s416
        %p418 = pneg %p215
        %p419 = pneg %p212
        %p420 = scmp.lt.s32.totalorder %s34, 1
        %s421 = scalar_select %p420, %s34, 1
        %s422 = smul.addr %s421, 4
        %s423 = smul.addr %s422, 8
        %s424 = scalar_lea.vmem %s8, %s423
        %p425 = pneg %p241
        %p426 = pneg %p238
        %p427 = pneg %p262
        %p428 = pneg %p259
        %p429 = pneg %p288
        %p430 = pneg %p285
        %s431 = sand.u32 %s275, 1
        %s432 = scalar_lea.sflag [#allocation7], %s431
        %s433 = sand.u32 %s275, 1
        %s434 = smul.addr %s433, 32
        %s435 = scalar_lea.vmem [#allocation6], %s434
        %s436 = smul.u32 %s34, 2
        %s437 = sadd.s32 %s436, %s35
        %s438 = sld [smem:[#allocation5 + %s437]]
        %p439 = scmp.lt.s32.totalorder %s34, 1
        %s440 = scalar_select %p439, %s34, 1
        %p441 = scmp.lt.s32.totalorder %s438, 3
        %s442 = scalar_select %p441, %s438, 3
        %s443 = smul.addr %s440, 4
        %s444 = sadd.s32 %s442, %s443
        %s445 = smul.addr %s444, 4
        %s446 = scalar_lea.vmem %s1, %s445
        %s447 = smul.u32 %s34, 2
        %s448 = sadd.s32 %s447, %s35
        %s449 = sld [smem:[#allocation5 + %s448]]
        %p450 = scmp.lt.s32.totalorder %s34, 1
        %s451 = scalar_select %p450, %s34, 1
        %p452 = scmp.lt.s32.totalorder %s35, 1
        %s453 = scalar_select %p452, %s35, 1
        %s454 = smul.addr %s451, 2
        %s455 = sadd.s32 %s453, %s454
        %s456 = smul.addr %s455, 8
        %s457 = scalar_lea.vmem %s2, %s456
        %s458 = smul.u32 %s34, 2
        %s459 = sadd.s32 %s458, %s35
        %s460 = sld [smem:[#allocation5 + %s459]]
        %p461 = scmp.lt.s32.totalorder %s460, 3
        %s462 = scalar_select %p461, %s460, 3
        %s463 = smul.addr %s462, 64
        %s464 = smul.addr %s463, 4
        %s465 = scalar_lea.vmem %s7, %s464
        %s466 = smul.u32 %s34, 2
        %s467 = sadd.s32 %s466, %s35
        %s468 = sld [smem:[#allocation5 + %s467]]
        %p469 = scmp.lt.s32.totalorder %s34, 1
        %s470 = scalar_select %p469, %s34, 1
        %s471 = smul.addr %s470, 4
        %s472 = smul.addr %s471, 8
        %s473 = scalar_lea.vmem %s8, %s472
        %s475 = smul.u32 %s34, 2
        %s476 = sadd.s32 %s475, %s35
        %s477 = sld [smem:[#allocation5 + %s476]]
        %v478 = vld [vmem:[%s446] sm:$0xf]
        %s479 = smul.u32 %s477, 16
        %s480 = smul.addr %s479, 4
        %s481 = scalar_lea.vmem %s3, %s480
        %v482 = vld [vmem:[%s481] sm:$0xf]
        %v483 = vld [vmem:[%s481 + $0x4] sm:$0xf]
        %v484 = vld [vmem:[%s481 + $0x8] sm:$0xf]
        %v485 = vld [vmem:[%s481 + $0xc] sm:$0xf]
        %v486 = vld [vmem:[%s481 + $0x10] sm:$0xf]
        %v487 = vld [vmem:[%s481 + $0x14] sm:$0xf]
        %v488 = vld [vmem:[%s481 + $0x18] sm:$0xf]
        %v489 = vld [vmem:[%s481 + $0x1c] sm:$0xf]
        %v490 = vld [vmem:[%s481 + $0x20] sm:$0xf]
        %v491 = vld [vmem:[%s481 + $0x24] sm:$0xf]
        %v492 = vld [vmem:[%s481 + $0x28] sm:$0xf]
        %v493 = vld [vmem:[%s481 + $0x2c] sm:$0xf]
        %v494 = vld [vmem:[%s481 + $0x30] sm:$0xf]
        %v495 = vld [vmem:[%s481 + $0x34] sm:$0xf]
        %v496 = vld [vmem:[%s481 + $0x38] sm:$0xf]
        %v497 = vld [vmem:[%s481 + $0x3c] sm:$0xf]
        %s498 = scalar_lea.vmem %s4, %s477
        %v499 = vld [vmem:[%s498] sm:$0x1]
        %v501 = vlaneseq
        %v502 = vshrl.u32 %v501, 7
        %v503 = vsub.s32 0, %v502
        %v504 = vrot.slane %v499, %v503
        %v522 = vunpack.c.l.b16 %v482
        %v523 = vunpack.c.l.b16 %v483
        %v524 = vunpack.c.l.b16 %v484
        %v525 = vunpack.c.l.b16 %v485
        %v526 = vunpack.c.l.b16 %v486
        %v527 = vunpack.c.l.b16 %v487
        %v528 = vunpack.c.l.b16 %v488
        %v529 = vunpack.c.l.b16 %v489
        %v530 = vunpack.c.l.b16 %v490
        %v531 = vunpack.c.l.b16 %v491
        %v532 = vunpack.c.l.b16 %v492
        %v533 = vunpack.c.l.b16 %v493
        %v534 = vunpack.c.l.b16 %v494
        %v535 = vunpack.c.l.b16 %v495
        %v536 = vunpack.c.l.b16 %v496
        %v537 = vunpack.c.l.b16 %v497
        %v538 = vpack.c.b16 %v523, %v522
        %v539 = vpack.c.b16 %v525, %v524
        %v540 = vpack.c.b16 %v527, %v526
        %v541 = vpack.c.b16 %v529, %v528
        %v542 = vpack.c.b16 %v531, %v530
        %v543 = vpack.c.b16 %v533, %v532
        %v544 = vpack.c.b16 %v535, %v534
        %v545 = vpack.c.b16 %v537, %v536
        %554 = vmatprep.subr.bf16.mxu0 0
        %555 = vmatpush1.bf16.msra.mxu0 %v538
        %556 = vmatprep.subr.bf16.mxu0 0
        %557 = vmatpush1.bf16.msra.mxu0 %v539
        %558 = vmatprep.subr.bf16.mxu0 0
        %559 = vmatpush1.bf16.msra.mxu0 %v540
        %560 = vmatprep.subr.bf16.mxu0 0
        %561 = vmatpush1.bf16.msra.mxu0 %v541
        %562 = vmatprep.subr.bf16.mxu0 0
        %563 = vmatpush1.bf16.msra.mxu0 %v542
        %564 = vmatprep.subr.bf16.mxu0 0
        %565 = vmatpush1.bf16.msra.mxu0 %v543
        %566 = vmatprep.subr.bf16.mxu0 0
        %567 = vmatpush1.bf16.msra.mxu0 %v544
        %568 = vmatprep.subr.bf16.mxu0 0
        %569 = vmatpush1.bf16.msra.mxu0 %v545
        %570 = vmatprep.subr.bf16.mxu0 0
        %571 = vmatpush1.bf16.msra.mxu0 0
        %572 = vmatprep.subr.bf16.mxu0 0
        %573 = vmatpush1.bf16.msra.mxu0 0
        %574 = vmatprep.subr.bf16.mxu0 0
        %575 = vmatpush1.bf16.msra.mxu0 0
        %576 = vmatprep.subr.bf16.mxu0 0
        %577 = vmatpush1.bf16.msra.mxu0 0
        %578 = vmatprep.subr.bf16.mxu0 0
        %579 = vmatpush1.bf16.msra.mxu0 0
        %580 = vmatprep.subr.bf16.mxu0 0
        %581 = vmatpush1.bf16.msra.mxu0 0
        %582 = vmatprep.subr.bf16.mxu0 0
        %583 = vmatpush1.bf16.msra.mxu0 0
        %584 = vmatprep.subr.bf16.mxu0 0
        %585 = vmatpush1.bf16.msra.mxu0 0
        %586 = vmatprep.mubr.bf16.mxu0 0
        %587 = vmatmul.mubr.bf16.gmra.mrb[0].mxu0 %v478
        %v588 = vpop.f32.mrb[0].mxu0
        %v589 = vadd.f32 %v504, %v588
        %v590 = vpop.f32.mrb[0].mxu0
        %v591 = vpop.f32.mrb[0].mxu0
        %v592 = vpop.f32.mrb[0].mxu0
        %593 = vdwg.mxu0
        %v594 = vmul.f32 %v589, %v589
        %v595 = vmul.f32 %v589, %v594
        %v596 = vmul.f32 %v595, 0.044715
        %v597 = vadd.f32 %v589, %v596
        %v598 = vmul.f32 %v597, 0.7978846
        %v599 = vtanh.pop %v598
        %v600 = vadd.f32 %v599, 1.0
        %v601 = vmul.f32 %v600, 0.5
        %v602 = vmul.f32 %v589, %v601
        %v603 = vpack.c.bf16 %v602, %v602
        %s604 = smul.addr %s479, 4
        %s605 = scalar_lea.vmem %s5, %s604
        %v606 = vld [vmem:[%s605] sm:$0xf]
        %v607 = vld [vmem:[%s605 + $0x4] sm:$0xf]
        %v608 = vld [vmem:[%s605 + $0x8] sm:$0xf]
        %v609 = vld [vmem:[%s605 + $0xc] sm:$0xf]
        %v610 = vld [vmem:[%s605 + $0x10] sm:$0xf]
        %v611 = vld [vmem:[%s605 + $0x14] sm:$0xf]
        %v612 = vld [vmem:[%s605 + $0x18] sm:$0xf]
        %v613 = vld [vmem:[%s605 + $0x1c] sm:$0xf]
        %v614 = vld [vmem:[%s605 + $0x20] sm:$0xf]
        %v615 = vld [vmem:[%s605 + $0x24] sm:$0xf]
        %v616 = vld [vmem:[%s605 + $0x28] sm:$0xf]
        %v617 = vld [vmem:[%s605 + $0x2c] sm:$0xf]
        %v618 = vld [vmem:[%s605 + $0x30] sm:$0xf]
        %v619 = vld [vmem:[%s605 + $0x34] sm:$0xf]
        %v620 = vld [vmem:[%s605 + $0x38] sm:$0xf]
        %v621 = vld [vmem:[%s605 + $0x3c] sm:$0xf]
        %s622 = scalar_lea.vmem %s6, %s477
        %v623 = vld [vmem:[%s622] sm:$0x1]
        %v625 = vlaneseq
        %v626 = vshrl.u32 %v625, 7
        %v627 = vsub.s32 0, %v626
        %v628 = vrot.slane %v623, %v627
        %v646 = vunpack.c.l.b16 %v606
        %v647 = vunpack.c.l.b16 %v607
        %v648 = vunpack.c.l.b16 %v608
        %v649 = vunpack.c.l.b16 %v609
        %v650 = vunpack.c.l.b16 %v610
        %v651 = vunpack.c.l.b16 %v611
        %v652 = vunpack.c.l.b16 %v612
        %v653 = vunpack.c.l.b16 %v613
        %v654 = vunpack.c.l.b16 %v614
        %v655 = vunpack.c.l.b16 %v615
        %v656 = vunpack.c.l.b16 %v616
        %v657 = vunpack.c.l.b16 %v617
        %v658 = vunpack.c.l.b16 %v618
        %v659 = vunpack.c.l.b16 %v619
        %v660 = vunpack.c.l.b16 %v620
        %v661 = vunpack.c.l.b16 %v621
        %v662 = vpack.c.b16 %v647, %v646
        %v663 = vpack.c.b16 %v649, %v648
        %v664 = vpack.c.b16 %v651, %v650
        %v665 = vpack.c.b16 %v653, %v652
        %v666 = vpack.c.b16 %v655, %v654
        %v667 = vpack.c.b16 %v657, %v656
        %v668 = vpack.c.b16 %v659, %v658
        %v669 = vpack.c.b16 %v661, %v660
        %678 = vmatprep.subr.bf16.mxu0 0
        %679 = vmatpush1.bf16.msra.mxu0 %v662
        %680 = vmatprep.subr.bf16.mxu0 0
        %681 = vmatpush1.bf16.msra.mxu0 %v663
        %682 = vmatprep.subr.bf16.mxu0 0
        %683 = vmatpush1.bf16.msra.mxu0 %v664
        %684 = vmatprep.subr.bf16.mxu0 0
        %685 = vmatpush1.bf16.msra.mxu0 %v665
        %686 = vmatprep.subr.bf16.mxu0 0
        %687 = vmatpush1.bf16.msra.mxu0 %v666
        %688 = vmatprep.subr.bf16.mxu0 0
        %689 = vmatpush1.bf16.msra.mxu0 %v667
        %690 = vmatprep.subr.bf16.mxu0 0
        %691 = vmatpush1.bf16.msra.mxu0 %v668
        %692 = vmatprep.subr.bf16.mxu0 0
        %693 = vmatpush1.bf16.msra.mxu0 %v669
        %694 = vmatprep.subr.bf16.mxu0 0
        %695 = vmatpush1.bf16.msra.mxu0 0
        %696 = vmatprep.subr.bf16.mxu0 0
        %697 = vmatpush1.bf16.msra.mxu0 0
        %698 = vmatprep.subr.bf16.mxu0 0
        %699 = vmatpush1.bf16.msra.mxu0 0
        %700 = vmatprep.subr.bf16.mxu0 0
        %701 = vmatpush1.bf16.msra.mxu0 0
        %702 = vmatprep.subr.bf16.mxu0 0
        %703 = vmatpush1.bf16.msra.mxu0 0
        %704 = vmatprep.subr.bf16.mxu0 0
        %705 = vmatpush1.bf16.msra.mxu0 0
        %706 = vmatprep.subr.bf16.mxu0 0
        %707 = vmatpush1.bf16.msra.mxu0 0
        %708 = vmatprep.subr.bf16.mxu0 0
        %709 = vmatpush1.bf16.msra.mxu0 0
        %710 = vmatprep.mubr.bf16.mxu0 0
        %711 = vmatmul.mubr.bf16.gmra.mrb[0].mxu0 %v603
        %v712 = vpop.f32.mrb[0].mxu0
        %v713 = vadd.f32 %v628, %v712
        %v714 = vpop.f32.mrb[0].mxu0
        %v715 = vpop.f32.mrb[0].mxu0
        %v716 = vpop.f32.mrb[0].mxu0
        %717 = vdwg.mxu0
        %v718 = vld [vmem:[%s457] sm:$0xff]
        %720 = vset.pattern.permute.xlu0 0
        %721 = vperm.xlu0 %720, %v718
        %v722 = vpop.permute.xlu0 %721
        %v724 = vmul.f32 %v713, %v722
        %v725 = vpack.c.bf16 %v724, %v724
        %v726 = vld [vmem:[%s465] sm:$0xff]
        %v727 = vld [vmem:[%s465 + $0x8] sm:$0xff]
        %v728 = vld [vmem:[%s465 + $0x10] sm:$0xff]
        %v729 = vld [vmem:[%s465 + $0x18] sm:$0xff]
        %v730 = vld [vmem:[%s465 + $0x20] sm:$0xff]
        %v731 = vld [vmem:[%s465 + $0x28] sm:$0xff]
        %v732 = vld [vmem:[%s465 + $0x30] sm:$0xff]
        %v733 = vld [vmem:[%s465 + $0x38] sm:$0xff]
        %v734 = vld [vmem:[%s465 + $0x40] sm:$0xff]
        %v735 = vld [vmem:[%s465 + $0x48] sm:$0xff]
        %v736 = vld [vmem:[%s465 + $0x50] sm:$0xff]
        %v737 = vld [vmem:[%s465 + $0x58] sm:$0xff]
        %v738 = vld [vmem:[%s465 + $0x60] sm:$0xff]
        %v739 = vld [vmem:[%s465 + $0x68] sm:$0xff]
        %v740 = vld [vmem:[%s465 + $0x70] sm:$0xff]
        %v741 = vld [vmem:[%s465 + $0x78] sm:$0xff]
        %v742 = vld [vmem:[%s465 + $0x80] sm:$0xff]
        %v743 = vld [vmem:[%s465 + $0x88] sm:$0xff]
        %v744 = vld [vmem:[%s465 + $0x90] sm:$0xff]
        %v745 = vld [vmem:[%s465 + $0x98] sm:$0xff]
        %v746 = vld [vmem:[%s465 + $0xa0] sm:$0xff]
        %v747 = vld [vmem:[%s465 + $0xa8] sm:$0xff]
        %v748 = vld [vmem:[%s465 + $0xb0] sm:$0xff]
        %v749 = vld [vmem:[%s465 + $0xb8] sm:$0xff]
        %v750 = vld [vmem:[%s465 + $0xc0] sm:$0xff]
        %v751 = vld [vmem:[%s465 + $0xc8] sm:$0xff]
        %v752 = vld [vmem:[%s465 + $0xd0] sm:$0xff]
        %v753 = vld [vmem:[%s465 + $0xd8] sm:$0xff]
        %v754 = vld [vmem:[%s465 + $0xe0] sm:$0xff]
        %v755 = vld [vmem:[%s465 + $0xe8] sm:$0xff]
        %v756 = vld [vmem:[%s465 + $0xf0] sm:$0xff]
        %v757 = vld [vmem:[%s465 + $0xf8] sm:$0xff]
        %p758 = scmp.eq.s32.totalorder %s35, 0
        // Predicated region
        $region57: #{s_mh_mlp_forward.1} parent=55 // pred_check
          %p759 = pneg %p758
        $region58: #{s_mh_mlp_forward.1} parent=55 // pred_check_branch
          %761 = sbr.rel (%p759) target = $region60
        $region59: #{s_mh_mlp_forward.1} parent=55 // pred_region
          %762 = vst [vmem:[#allocation2] sm:$0xf] %v725
          %v795 = vunpack.c.l.b16 %v726
          %v796 = vunpack.c.h.b16 %v726
          %v797 = vunpack.c.l.b16 %v727
          %v798 = vunpack.c.h.b16 %v727
          %v799 = vunpack.c.l.b16 %v728
          %v800 = vunpack.c.h.b16 %v728
          %v801 = vunpack.c.l.b16 %v729
          %v802 = vunpack.c.h.b16 %v729
          %v803 = vunpack.c.l.b16 %v730
          %v804 = vunpack.c.h.b16 %v730
          %v805 = vunpack.c.l.b16 %v731
          %v806 = vunpack.c.h.b16 %v731
          %v807 = vunpack.c.l.b16 %v732
          %v808 = vunpack.c.h.b16 %v732
          %v809 = vunpack.c.l.b16 %v733
          %v810 = vunpack.c.h.b16 %v733
          %v811 = vunpack.c.l.b16 %v734
          %v812 = vunpack.c.h.b16 %v734
          %v813 = vunpack.c.l.b16 %v735
          %v814 = vunpack.c.h.b16 %v735
          %v815 = vunpack.c.l.b16 %v736
          %v816 = vunpack.c.h.b16 %v736
          %v817 = vunpack.c.l.b16 %v737
          %v818 = vunpack.c.h.b16 %v737
          %v819 = vunpack.c.l.b16 %v738
          %v820 = vunpack.c.h.b16 %v738
          %v821 = vunpack.c.l.b16 %v739
          %v822 = vunpack.c.h.b16 %v739
          %v823 = vunpack.c.l.b16 %v740
          %v824 = vunpack.c.h.b16 %v740
          %v825 = vunpack.c.l.b16 %v741
          %v826 = vunpack.c.h.b16 %v741
          %v827 = vunpack.c.l.b16 %v742
          %v828 = vunpack.c.h.b16 %v742
          %v829 = vunpack.c.l.b16 %v743
          %v830 = vunpack.c.h.b16 %v743
          %v831 = vunpack.c.l.b16 %v744
          %v832 = vunpack.c.h.b16 %v744
          %v833 = vunpack.c.l.b16 %v745
          %v834 = vunpack.c.h.b16 %v745
          %v835 = vunpack.c.l.b16 %v746
          %v836 = vunpack.c.h.b16 %v746
          %v837 = vunpack.c.l.b16 %v747
          %v838 = vunpack.c.h.b16 %v747
          %v839 = vunpack.c.l.b16 %v748
          %v840 = vunpack.c.h.b16 %v748
          %v841 = vunpack.c.l.b16 %v749
          %v842 = vunpack.c.h.b16 %v749
          %v843 = vunpack.c.l.b16 %v750
          %v844 = vunpack.c.h.b16 %v750
          %v845 = vunpack.c.l.b16 %v751
          %v846 = vunpack.c.h.b16 %v751
          %v847 = vunpack.c.l.b16 %v752
          %v848 = vunpack.c.h.b16 %v752
          %v849 = vunpack.c.l.b16 %v753
          %v850 = vunpack.c.h.b16 %v753
          %v851 = vunpack.c.l.b16 %v754
          %v852 = vunpack.c.h.b16 %v754
          %v853 = vunpack.c.l.b16 %v755
          %v854 = vunpack.c.h.b16 %v755
          %v855 = vunpack.c.l.b16 %v756
          %v856 = vunpack.c.h.b16 %v756
          %v857 = vunpack.c.l.b16 %v757
          %v858 = vunpack.c.h.b16 %v757
          %v859 = vpack.c.b16 %v799, %v795
          %v860 = vpack.c.b16 %v800, %v796
          %v861 = vpack.c.b16 %v801, %v797
          %v862 = vpack.c.b16 %v802, %v798
          %v863 = vpack.c.b16 %v807, %v803
          %v864 = vpack.c.b16 %v808, %v804
          %v865 = vpack.c.b16 %v809, %v805
          %v866 = vpack.c.b16 %v810, %v806
          %v867 = vpack.c.b16 %v815, %v811
          %v868 = vpack.c.b16 %v816, %v812
          %v869 = vpack.c.b16 %v817, %v813
          %v870 = vpack.c.b16 %v818, %v814
          %v871 = vpack.c.b16 %v823, %v819
          %v872 = vpack.c.b16 %v824, %v820
          %v873 = vpack.c.b16 %v825, %v821
          %v874 = vpack.c.b16 %v826, %v822
          %v875 = vpack.c.b16 %v831, %v827
          %v876 = vpack.c.b16 %v832, %v828
          %v877 = vpack.c.b16 %v833, %v829
          %v878 = vpack.c.b16 %v834, %v830
          %v879 = vpack.c.b16 %v839, %v835
          %v880 = vpack.c.b16 %v840, %v836
          %v881 = vpack.c.b16 %v841, %v837
          %v882 = vpack.c.b16 %v842, %v838
          %v883 = vpack.c.b16 %v847, %v843
          %v884 = vpack.c.b16 %v848, %v844
          %v885 = vpack.c.b16 %v849, %v845
          %v886 = vpack.c.b16 %v850, %v846
          %v887 = vpack.c.b16 %v855, %v851
          %v888 = vpack.c.b16 %v856, %v852
          %v889 = vpack.c.b16 %v857, %v853
          %v890 = vpack.c.b16 %v858, %v854
          %923 = vst [vmem:[#allocation3] sm:$0xff] %v859
          %924 = vst [vmem:[#allocation3 + $0x8] sm:$0xff] %v860
          %925 = vst [vmem:[#allocation3 + $0x10] sm:$0xff] %v861
          %926 = vst [vmem:[#allocation3 + $0x18] sm:$0xff] %v862
          %927 = vst [vmem:[#allocation3 + $0x20] sm:$0xff] %v863
          %928 = vst [vmem:[#allocation3 + $0x28] sm:$0xff] %v864
          %929 = vst [vmem:[#allocation3 + $0x30] sm:$0xff] %v865
          %930 = vst [vmem:[#allocation3 + $0x38] sm:$0xff] %v866
          %931 = vst [vmem:[#allocation3 + $0x40] sm:$0xff] %v867
          %932 = vst [vmem:[#allocation3 + $0x48] sm:$0xff] %v868
          %933 = vst [vmem:[#allocation3 + $0x50] sm:$0xff] %v869
          %934 = vst [vmem:[#allocation3 + $0x58] sm:$0xff] %v870
          %935 = vst [vmem:[#allocation3 + $0x60] sm:$0xff] %v871
          %936 = vst [vmem:[#allocation3 + $0x68] sm:$0xff] %v872
          %937 = vst [vmem:[#allocation3 + $0x70] sm:$0xff] %v873
          %938 = vst [vmem:[#allocation3 + $0x78] sm:$0xff] %v874
          %939 = vst [vmem:[#allocation3 + $0x80] sm:$0xff] %v875
          %940 = vst [vmem:[#allocation3 + $0x88] sm:$0xff] %v876
          %941 = vst [vmem:[#allocation3 + $0x90] sm:$0xff] %v877
          %942 = vst [vmem:[#allocation3 + $0x98] sm:$0xff] %v878
          %943 = vst [vmem:[#allocation3 + $0xa0] sm:$0xff] %v879
          %944 = vst [vmem:[#allocation3 + $0xa8] sm:$0xff] %v880
          %945 = vst [vmem:[#allocation3 + $0xb0] sm:$0xff] %v881
          %946 = vst [vmem:[#allocation3 + $0xb8] sm:$0xff] %v882
          %947 = vst [vmem:[#allocation3 + $0xc0] sm:$0xff] %v883
          %948 = vst [vmem:[#allocation3 + $0xc8] sm:$0xff] %v884
          %949 = vst [vmem:[#allocation3 + $0xd0] sm:$0xff] %v885
          %950 = vst [vmem:[#allocation3 + $0xd8] sm:$0xff] %v886
          %951 = vst [vmem:[#allocation3 + $0xe0] sm:$0xff] %v887
          %952 = vst [vmem:[#allocation3 + $0xe8] sm:$0xff] %v888
          %953 = vst [vmem:[#allocation3 + $0xf0] sm:$0xff] %v889
          %954 = vst [vmem:[#allocation3 + $0xf8] sm:$0xff] %v890
        $region60: #{s_mh_mlp_forward.1} parent=55 // pred_fallthru
          _
        %p955 = scmp.eq.s32.totalorder %s35, 1
        // Predicated region
        $region61: #{s_mh_mlp_forward.1} parent=55 // pred_check
          %p956 = pneg %p955
        $region62: #{s_mh_mlp_forward.1} parent=55 // pred_check_branch
          %958 = sbr.rel (%p956) target = $region64
        $region63: #{s_mh_mlp_forward.1} parent=55 // pred_region
          %959 = vst [vmem:[#allocation2 + $0x4] sm:$0xf] %v725
          %v992 = vunpack.c.l.b16 %v726
          %v993 = vunpack.c.h.b16 %v726
          %v994 = vunpack.c.l.b16 %v727
          %v995 = vunpack.c.h.b16 %v727
          %v996 = vunpack.c.l.b16 %v728
          %v997 = vunpack.c.h.b16 %v728
          %v998 = vunpack.c.l.b16 %v729
          %v999 = vunpack.c.h.b16 %v729
          %v1000 = vunpack.c.l.b16 %v730
          %v1001 = vunpack.c.h.b16 %v730
          %v1002 = vunpack.c.l.b16 %v731
          %v1003 = vunpack.c.h.b16 %v731
          %v1004 = vunpack.c.l.b16 %v732
          %v1005 = vunpack.c.h.b16 %v732
          %v1006 = vunpack.c.l.b16 %v733
          %v1007 = vunpack.c.h.b16 %v733
          %v1008 = vunpack.c.l.b16 %v734
          %v1009 = vunpack.c.h.b16 %v734
          %v1010 = vunpack.c.l.b16 %v735
          %v1011 = vunpack.c.h.b16 %v735
          %v1012 = vunpack.c.l.b16 %v736
          %v1013 = vunpack.c.h.b16 %v736
          %v1014 = vunpack.c.l.b16 %v737
          %v1015 = vunpack.c.h.b16 %v737
          %v1016 = vunpack.c.l.b16 %v738
          %v1017 = vunpack.c.h.b16 %v738
          %v1018 = vunpack.c.l.b16 %v739
          %v1019 = vunpack.c.h.b16 %v739
          %v1020 = vunpack.c.l.b16 %v740
          %v1021 = vunpack.c.h.b16 %v740
          %v1022 = vunpack.c.l.b16 %v741
          %v1023 = vunpack.c.h.b16 %v741
          %v1024 = vunpack.c.l.b16 %v742
          %v1025 = vunpack.c.h.b16 %v742
          %v1026 = vunpack.c.l.b16 %v743
          %v1027 = vunpack.c.h.b16 %v743
          %v1028 = vunpack.c.l.b16 %v744
          %v1029 = vunpack.c.h.b16 %v744
          %v1030 = vunpack.c.l.b16 %v745
          %v1031 = vunpack.c.h.b16 %v745
          %v1032 = vunpack.c.l.b16 %v746
          %v1033 = vunpack.c.h.b16 %v746
          %v1034 = vunpack.c.l.b16 %v747
          %v1035 = vunpack.c.h.b16 %v747
          %v1036 = vunpack.c.l.b16 %v748
          %v1037 = vunpack.c.h.b16 %v748
          %v1038 = vunpack.c.l.b16 %v749
          %v1039 = vunpack.c.h.b16 %v749
          %v1040 = vunpack.c.l.b16 %v750
          %v1041 = vunpack.c.h.b16 %v750
          %v1042 = vunpack.c.l.b16 %v751
          %v1043 = vunpack.c.h.b16 %v751
          %v1044 = vunpack.c.l.b16 %v752
          %v1045 = vunpack.c.h.b16 %v752
          %v1046 = vunpack.c.l.b16 %v753
          %v1047 = vunpack.c.h.b16 %v753
          %v1048 = vunpack.c.l.b16 %v754
          %v1049 = vunpack.c.h.b16 %v754
          %v1050 = vunpack.c.l.b16 %v755
          %v1051 = vunpack.c.h.b16 %v755
          %v1052 = vunpack.c.l.b16 %v756
          %v1053 = vunpack.c.h.b16 %v756
          %v1054 = vunpack.c.l.b16 %v757
          %v1055 = vunpack.c.h.b16 %v757
          %v1056 = vpack.c.b16 %v996, %v992
          %v1057 = vpack.c.b16 %v997, %v993
          %v1058 = vpack.c.b16 %v998, %v994
          %v1059 = vpack.c.b16 %v999, %v995
          %v1060 = vpack.c.b16 %v1004, %v1000
          %v1061 = vpack.c.b16 %v1005, %v1001
          %v1062 = vpack.c.b16 %v1006, %v1002
          %v1063 = vpack.c.b16 %v1007, %v1003
          %v1064 = vpack.c.b16 %v1012, %v1008
          %v1065 = vpack.c.b16 %v1013, %v1009
          %v1066 = vpack.c.b16 %v1014, %v1010
          %v1067 = vpack.c.b16 %v1015, %v1011
          %v1068 = vpack.c.b16 %v1020, %v1016
          %v1069 = vpack.c.b16 %v1021, %v1017
          %v1070 = vpack.c.b16 %v1022, %v1018
          %v1071 = vpack.c.b16 %v1023, %v1019
          %v1072 = vpack.c.b16 %v1028, %v1024
          %v1073 = vpack.c.b16 %v1029, %v1025
          %v1074 = vpack.c.b16 %v1030, %v1026
          %v1075 = vpack.c.b16 %v1031, %v1027
          %v1076 = vpack.c.b16 %v1036, %v1032
          %v1077 = vpack.c.b16 %v1037, %v1033
          %v1078 = vpack.c.b16 %v1038, %v1034
          %v1079 = vpack.c.b16 %v1039, %v1035
          %v1080 = vpack.c.b16 %v1044, %v1040
          %v1081 = vpack.c.b16 %v1045, %v1041
          %v1082 = vpack.c.b16 %v1046, %v1042
          %v1083 = vpack.c.b16 %v1047, %v1043
          %v1084 = vpack.c.b16 %v1052, %v1048
          %v1085 = vpack.c.b16 %v1053, %v1049
          %v1086 = vpack.c.b16 %v1054, %v1050
          %v1087 = vpack.c.b16 %v1055, %v1051
          %1120 = vst [vmem:[#allocation3 + $0x100] sm:$0xff] %v1056
          %1121 = vst [vmem:[#allocation3 + $0x108] sm:$0xff] %v1057
          %1122 = vst [vmem:[#allocation3 + $0x110] sm:$0xff] %v1058
          %1123 = vst [vmem:[#allocation3 + $0x118] sm:$0xff] %v1059
          %1124 = vst [vmem:[#allocation3 + $0x120] sm:$0xff] %v1060
          %1125 = vst [vmem:[#allocation3 + $0x128] sm:$0xff] %v1061
          %1126 = vst [vmem:[#allocation3 + $0x130] sm:$0xff] %v1062
          %1127 = vst [vmem:[#allocation3 + $0x138] sm:$0xff] %v1063
          %1128 = vst [vmem:[#allocation3 + $0x140] sm:$0xff] %v1064
          %1129 = vst [vmem:[#allocation3 + $0x148] sm:$0xff] %v1065
          %1130 = vst [vmem:[#allocation3 + $0x150] sm:$0xff] %v1066
          %1131 = vst [vmem:[#allocation3 + $0x158] sm:$0xff] %v1067
          %1132 = vst [vmem:[#allocation3 + $0x160] sm:$0xff] %v1068
          %1133 = vst [vmem:[#allocation3 + $0x168] sm:$0xff] %v1069
          %1134 = vst [vmem:[#allocation3 + $0x170] sm:$0xff] %v1070
          %1135 = vst [vmem:[#allocation3 + $0x178] sm:$0xff] %v1071
          %1136 = vst [vmem:[#allocation3 + $0x180] sm:$0xff] %v1072
          %1137 = vst [vmem:[#allocation3 + $0x188] sm:$0xff] %v1073
          %1138 = vst [vmem:[#allocation3 + $0x190] sm:$0xff] %v1074
          %1139 = vst [vmem:[#allocation3 + $0x198] sm:$0xff] %v1075
          %1140 = vst [vmem:[#allocation3 + $0x1a0] sm:$0xff] %v1076
          %1141 = vst [vmem:[#allocation3 + $0x1a8] sm:$0xff] %v1077
          %1142 = vst [vmem:[#allocation3 + $0x1b0] sm:$0xff] %v1078
          %1143 = vst [vmem:[#allocation3 + $0x1b8] sm:$0xff] %v1079
          %1144 = vst [vmem:[#allocation3 + $0x1c0] sm:$0xff] %v1080
          %1145 = vst [vmem:[#allocation3 + $0x1c8] sm:$0xff] %v1081
          %1146 = vst [vmem:[#allocation3 + $0x1d0] sm:$0xff] %v1082
          %1147 = vst [vmem:[#allocation3 + $0x1d8] sm:$0xff] %v1083
          %1148 = vst [vmem:[#allocation3 + $0x1e0] sm:$0xff] %v1084
          %1149 = vst [vmem:[#allocation3 + $0x1e8] sm:$0xff] %v1085
          %1150 = vst [vmem:[#allocation3 + $0x1f0] sm:$0xff] %v1086
          %1151 = vst [vmem:[#allocation3 + $0x1f8] sm:$0xff] %v1087
          %v1152 = vld [vmem:[%s473] sm:$0xff]
          %v1153 = vld [vmem:[%s473 + $0x8] sm:$0xff]
          %v1154 = vld [vmem:[%s473 + $0x10] sm:$0xff]
          %v1155 = vld [vmem:[%s473 + $0x18] sm:$0xff]
          %v1156 = vld [vmem:[%s9] sm:$0xf]
          %v1158 = vlaneseq
          %v1159 = vshrl.u32 %v1158, 7
          %v1160 = vsub.s32 0, %v1159
          %v1161 = vrot.slane %v1156, %v1160
          %v1162 = vlaneseq
          %v1163 = vshrl.u32 %v1162, 7
          %v1164 = vsub.s32 1, %v1163
          %v1165 = vrot.slane %v1156, %v1164
          %v1166 = vlaneseq
          %v1167 = vshrl.u32 %v1166, 7
          %v1168 = vsub.s32 2, %v1167
          %v1169 = vrot.slane %v1156, %v1168
          %v1170 = vlaneseq
          %v1171 = vshrl.u32 %v1170, 7
          %v1172 = vsub.s32 3, %v1171
          %v1173 = vrot.slane %v1156, %v1172
          %v1178 = vadd.f32 %v1152, %v1161
          %v1179 = vadd.f32 %v1153, %v1165
          %v1180 = vadd.f32 %v1154, %v1169
          %v1181 = vadd.f32 %v1155, %v1173
          %v1182 = vld [vmem:[#allocation2] sm:$0xff]
          %v1183 = vld [vmem:[#allocation3] sm:$0xff]
          %v1184 = vld [vmem:[#allocation3 + $0x8] sm:$0xff]
          %v1185 = vld [vmem:[#allocation3 + $0x10] sm:$0xff]
          %v1186 = vld [vmem:[#allocation3 + $0x18] sm:$0xff]
          %v1187 = vld [vmem:[#allocation3 + $0x20] sm:$0xff]
          %v1188 = vld [vmem:[#allocation3 + $0x28] sm:$0xff]
          %v1189 = vld [vmem:[#allocation3 + $0x30] sm:$0xff]
          %v1190 = vld [vmem:[#allocation3 + $0x38] sm:$0xff]
          %v1191 = vld [vmem:[#allocation3 + $0x40] sm:$0xff]
          %v1192 = vld [vmem:[#allocation3 + $0x48] sm:$0xff]
          %v1193 = vld [vmem:[#allocation3 + $0x50] sm:$0xff]
          %v1194 = vld [vmem:[#allocation3 + $0x58] sm:$0xff]
          %v1195 = vld [vmem:[#allocation3 + $0x60] sm:$0xff]
          %v1196 = vld [vmem:[#allocation3 + $0x68] sm:$0xff]
          %v1197 = vld [vmem:[#allocation3 + $0x70] sm:$0xff]
          %v1198 = vld [vmem:[#allocation3 + $0x78] sm:$0xff]
          %v1199 = vld [vmem:[#allocation3 + $0x80] sm:$0xff]
          %v1200 = vld [vmem:[#allocation3 + $0x88] sm:$0xff]
          %v1201 = vld [vmem:[#allocation3 + $0x90] sm:$0xff]
          %v1202 = vld [vmem:[#allocation3 + $0x98] sm:$0xff]
          %v1203 = vld [vmem:[#allocation3 + $0xa0] sm:$0xff]
          %v1204 = vld [vmem:[#allocation3 + $0xa8] sm:$0xff]
          %v1205 = vld [vmem:[#allocation3 + $0xb0] sm:$0xff]
          %v1206 = vld [vmem:[#allocation3 + $0xb8] sm:$0xff]
          %v1207 = vld [vmem:[#allocation3 + $0xc0] sm:$0xff]
          %v1208 = vld [vmem:[#allocation3 + $0xc8] sm:$0xff]
          %v1209 = vld [vmem:[#allocation3 + $0xd0] sm:$0xff]
          %v1210 = vld [vmem:[#allocation3 + $0xd8] sm:$0xff]
          %v1211 = vld [vmem:[#allocation3 + $0xe0] sm:$0xff]
          %v1212 = vld [vmem:[#allocation3 + $0xe8] sm:$0xff]
          %v1213 = vld [vmem:[#allocation3 + $0xf0] sm:$0xff]
          %v1214 = vld [vmem:[#allocation3 + $0xf8] sm:$0xff]
          %v1215 = vld [vmem:[#allocation3 + $0x100] sm:$0xff]
          %v1216 = vld [vmem:[#allocation3 + $0x108] sm:$0xff]
          %v1217 = vld [vmem:[#allocation3 + $0x110] sm:$0xff]
          %v1218 = vld [vmem:[#allocation3 + $0x118] sm:$0xff]
          %v1219 = vld [vmem:[#allocation3 + $0x120] sm:$0xff]
          %v1220 = vld [vmem:[#allocation3 + $0x128] sm:$0xff]
          %v1221 = vld [vmem:[#allocation3 + $0x130] sm:$0xff]
          %v1222 = vld [vmem:[#allocation3 + $0x138] sm:$0xff]
          %v1223 = vld [vmem:[#allocation3 + $0x140] sm:$0xff]
          %v1224 = vld [vmem:[#allocation3 + $0x148] sm:$0xff]
          %v1225 = vld [vmem:[#allocation3 + $0x150] sm:$0xff]
          %v1226 = vld [vmem:[#allocation3 + $0x158] sm:$0xff]
          %v1227 = vld [vmem:[#allocation3 + $0x160] sm:$0xff]
          %v1228 = vld [vmem:[#allocation3 + $0x168] sm:$0xff]
          %v1229 = vld [vmem:[#allocation3 + $0x170] sm:$0xff]
          %v1230 = vld [vmem:[#allocation3 + $0x178] sm:$0xff]
          %v1231 = vld [vmem:[#allocation3 + $0x180] sm:$0xff]
          %v1232 = vld [vmem:[#allocation3 + $0x188] sm:$0xff]
          %v1233 = vld [vmem:[#allocation3 + $0x190] sm:$0xff]
          %v1234 = vld [vmem:[#allocation3 + $0x198] sm:$0xff]
          %v1235 = vld [vmem:[#allocation3 + $0x1a0] sm:$0xff]
          %v1236 = vld [vmem:[#allocation3 + $0x1a8] sm:$0xff]
          %v1237 = vld [vmem:[#allocation3 + $0x1b0] sm:$0xff]
          %v1238 = vld [vmem:[#allocation3 + $0x1b8] sm:$0xff]
          %v1239 = vld [vmem:[#allocation3 + $0x1c0] sm:$0xff]
          %v1240 = vld [vmem:[#allocation3 + $0x1c8] sm:$0xff]
          %v1241 = vld [vmem:[#allocation3 + $0x1d0] sm:$0xff]
          %v1242 = vld [vmem:[#allocation3 + $0x1d8] sm:$0xff]
          %v1243 = vld [vmem:[#allocation3 + $0x1e0] sm:$0xff]
          %v1244 = vld [vmem:[#allocation3 + $0x1e8] sm:$0xff]
          %v1245 = vld [vmem:[#allocation3 + $0x1f0] sm:$0xff]
          %v1246 = vld [vmem:[#allocation3 + $0x1f8] sm:$0xff]
          %v1248 = vunpack.c.l.b16 %v1182
          %v1249 = vunpack.c.h.b16 %v1182
          %v1250 = vpack.c.b16 %v1248, %v1248
          %v1251 = vpack.c.b16 %v1249, %v1249
          %1254 = vmatprep.subr.bf16.mxu0 %v1184
          %1255 = vmatpush1.bf16.msra.mxu0 %v1183
          %1256 = vmatprep.subr.bf16.mxu0 %v1188
          %1257 = vmatpush1.bf16.msra.mxu0 %v1187
          %1258 = vmatprep.subr.bf16.mxu0 %v1192
          %1259 = vmatpush1.bf16.msra.mxu0 %v1191
          %1260 = vmatprep.subr.bf16.mxu0 %v1196
          %1261 = vmatpush1.bf16.msra.mxu0 %v1195
          %1262 = vmatprep.subr.bf16.mxu0 %v1200
          %1263 = vmatpush1.bf16.msra.mxu0 %v1199
          %1264 = vmatprep.subr.bf16.mxu0 %v1204
          %1265 = vmatpush1.bf16.msra.mxu0 %v1203
          %1266 = vmatprep.subr.bf16.mxu0 %v1208
          %1267 = vmatpush1.bf16.msra.mxu0 %v1207
          %1268 = vmatprep.subr.bf16.mxu0 %v1212
          %1269 = vmatpush1.bf16.msra.mxu0 %v1211
          %1270 = vmatprep.subr.bf16.mxu0 %v1216
          %1271 = vmatpush1.bf16.msra.mxu0 %v1215
          %1272 = vmatprep.subr.bf16.mxu0 %v1220
          %1273 = vmatpush1.bf16.msra.mxu0 %v1219
          %1274 = vmatprep.subr.bf16.mxu0 %v1224
          %1275 = vmatpush1.bf16.msra.mxu0 %v1223
          %1276 = vmatprep.subr.bf16.mxu0 %v1228
          %1277 = vmatpush1.bf16.msra.mxu0 %v1227
          %1278 = vmatprep.subr.bf16.mxu0 %v1232
          %1279 = vmatpush1.bf16.msra.mxu0 %v1231
          %1280 = vmatprep.subr.bf16.mxu0 %v1236
          %1281 = vmatpush1.bf16.msra.mxu0 %v1235
          %1282 = vmatprep.subr.bf16.mxu0 %v1240
          %1283 = vmatpush1.bf16.msra.mxu0 %v1239
          %1284 = vmatprep.subr.bf16.mxu0 %v1244
          %1285 = vmatpush1.bf16.msra.mxu0 %v1243
          %1286 = vmatprep.mubr.bf16.mxu0 %v1251
          %1287 = vmatmul.mubr.bf16.gmra.mrb[0].mxu0 %v1250
          %v1288 = vpop.f32.mrb[0].mxu0
          %v1289 = vadd.f32 0.0, %v1288
          %v1290 = vpop.f32.mrb[0].mxu0
          %v1291 = vadd.f32 0.0, %v1290
          %v1292 = vpop.f32.mrb[0].mxu0
          %v1293 = vpop.f32.mrb[0].mxu0
          %1294 = vdwg.mxu0
          %1295 = vmatprep.subr.bf16.mxu0 %v1186
          %1296 = vmatpush1.bf16.msra.mxu0 %v1185
          %1297 = vmatprep.subr.bf16.mxu0 %v1190
          %1298 = vmatpush1.bf16.msra.mxu0 %v1189
          %1299 = vmatprep.subr.bf16.mxu0 %v1194
          %1300 = vmatpush1.bf16.msra.mxu0 %v1193
          %1301 = vmatprep.subr.bf16.mxu0 %v1198
          %1302 = vmatpush1.bf16.msra.mxu0 %v1197
          %1303 = vmatprep.subr.bf16.mxu0 %v1202
          %1304 = vmatpush1.bf16.msra.mxu0 %v1201
          %1305 = vmatprep.subr.bf16.mxu0 %v1206
          %1306 = vmatpush1.bf16.msra.mxu0 %v1205
          %1307 = vmatprep.subr.bf16.mxu0 %v1210
          %1308 = vmatpush1.bf16.msra.mxu0 %v1209
          %1309 = vmatprep.subr.bf16.mxu0 %v1214
          %1310 = vmatpush1.bf16.msra.mxu0 %v1213
          %1311 = vmatprep.subr.bf16.mxu0 %v1218
          %1312 = vmatpush1.bf16.msra.mxu0 %v1217
          %1313 = vmatprep.subr.bf16.mxu0 %v1222
          %1314 = vmatpush1.bf16.msra.mxu0 %v1221
          %1315 = vmatprep.subr.bf16.mxu0 %v1226
          %1316 = vmatpush1.bf16.msra.mxu0 %v1225
          %1317 = vmatprep.subr.bf16.mxu0 %v1230
          %1318 = vmatpush1.bf16.msra.mxu0 %v1229
          %1319 = vmatprep.subr.bf16.mxu0 %v1234
          %1320 = vmatpush1.bf16.msra.mxu0 %v1233
          %1321 = vmatprep.subr.bf16.mxu0 %v1238
          %1322 = vmatpush1.bf16.msra.mxu0 %v1237
          %1323 = vmatprep.subr.bf16.mxu0 %v1242
          %1324 = vmatpush1.bf16.msra.mxu0 %v1241
          %1325 = vmatprep.subr.bf16.mxu0 %v1246
          %1326 = vmatpush1.bf16.msra.mxu0 %v1245
          %1327 = vmatprep.mubr.bf16.mxu0 %v1251
          %1328 = vmatmul.mubr.bf16.gmra.mrb[0].mxu0 %v1250
          %v1329 = vpop.f32.mrb[0].mxu0
          %v1330 = vadd.f32 0.0, %v1329
          %v1331 = vpop.f32.mrb[0].mxu0
          %v1332 = vadd.f32 0.0, %v1331
          %v1333 = vpop.f32.mrb[0].mxu0
          %v1334 = vpop.f32.mrb[0].mxu0
          %1335 = vdwg.mxu0
          %v1336 = vadd.f32 %v1178, %v1289
          %v1337 = vadd.f32 %v1179, %v1291
          %v1338 = vadd.f32 %v1180, %v1330
          %v1339 = vadd.f32 %v1181, %v1332
          %1340 = vst [vmem:[%s435] sm:$0xff] %v1336
          %1341 = vst [vmem:[%s435 + $0x8] sm:$0xff] %v1337
          %1342 = vst [vmem:[%s435 + $0x10] sm:$0xff] %v1338
          %1343 = vst [vmem:[%s435 + $0x18] sm:$0xff] %v1339
        $region64: #{s_mh_mlp_forward.1} parent=55 // pred_fallthru
          _
        %s1344 = sand.u32 %s275, 1
        %s1345 = scalar_lea.sflag [#allocation7], %s1344
        %s1346 = sand.u32 %s275, 1
        %s1347 = smul.addr %s1346, 32
        %s1348 = scalar_lea.vmem [#allocation6], %s1347
        // Predicated region
        $region65: #{s_mh_mlp_forward.1} parent=55 // pred_check
          %p1349 = pneg %p285
        $region66: #{s_mh_mlp_forward.1} parent=55 // pred_check_branch
          %1351 = sbr.rel (%p1349) target = $region68
        $region67: #{s_mh_mlp_forward.1} parent=55 // pred_region
          %s1353 = ssub.s32 512, 512
          %1354 = vsyncadd %s1345, %s1353
          %s1355 = smul.addr %s34, 4
          %s1356 = smul.addr %s1355, 128
          %s1357 = scalar_lea.hbm %s10, %s1356
          %s1359 = sshll.u32 %s1348, 4
          %s1360 = int_to_ptr.vmem [resolvable:$true] %s1359
          %1362 = dma.vmem_to_hbm [thread:$0]  %s1360, 512, %s1357, %s1345
        $region68: #{s_mh_mlp_forward.1} parent=55 // pred_fallthru
          _
      $region56: #{s_mh_mlp_forward.1} parent=5 // pred_fallthru
        _
      %p1363 = scmp.le.s32.totalorder 2, %s25
      // Predicated region
      $region69: #{s_mh_mlp_forward.1} parent=5 // pred_check
        %p1364 = pneg %p1363
      $region70: #{s_mh_mlp_forward.1} parent=5 // pred_check_branch
        %1366 = sbr.rel (%p1364) target = $region72
      $region71: #{s_mh_mlp_forward.1} parent=5 // pred_region
        %s1367 = ssub.s32 %s25, 2
        // Predicated region
        $region73: #{s_mh_mlp_forward.1} parent=71 // pred_check
          %p1368 = pneg %p291
        $region74: #{s_mh_mlp_forward.1} parent=71 // pred_check_branch
          %1370 = sbr.rel (%p1368) target = $region76
        $region75: #{s_mh_mlp_forward.1} parent=71 // pred_region
          %s1371 = sand.u32 %s276, 1
          %s1372 = scalar_lea.sflag [#allocation7], %s1371
          %s1373 = sand.u32 %s276, 1
          %s1374 = smul.addr %s1373, 32
          %s1375 = scalar_lea.vmem [#allocation6], %s1374
          %1376 = dma.done %s1372, 512
        $region76: #{s_mh_mlp_forward.1} parent=71 // pred_fallthru
          _
      $region72: #{s_mh_mlp_forward.1} parent=5 // pred_fallthru
        _
    $region6: #{s_mh_mlp_forward.1} parent=1 // loop_footer
      %s29 = sadd.s32 1, %s25
    $region7: #{s_mh_mlp_forward.1} parent=1 // loop_footer_branch
      %24 = sbr.rel target = $region3
    $region8: #{s_mh_mlp_forward.1} parent=1 // loop_exit
      _
    %1377 = vsyncpa [#allocation7], 1
    %s1378 = scalar_lea.sflag [#allocation7], 1
    %1379 = vsyncpa %s1378, 1

</llo_original>
